<compile_context>
chip_gen: v7x
topology: tpu7x:2x2x1
jax: 0.10.0
libtpu: 0.0.40
codegen_flags: <defaults>
</compile_context>

<pallas_src>
import functools

import jax
import jax.numpy as jnp
from jax.experimental import pallas as pl
from jax.experimental.pallas import tpu as pltpu

_NEG_INF = -1e30


def _vmem_limit_bytes():
    # generation-aware scoped-VMEM limit (v7x: 64 MiB physical; v5e/v6e: 128 MiB)
    try:
        cap = int(pltpu.get_tpu_info().vmem_capacity_bytes)
    except Exception:
        cap = 64 * 1024 * 1024          # conservative (v7x-sized) fallback
    return max(32 * 1024 * 1024, min(int(cap * 0.65), 96 * 1024 * 1024))


_VMEM_LIMIT = _vmem_limit_bytes()


# ----------------------------------------------------------------------------
# helpers
# ----------------------------------------------------------------------------
def _round_up(n, m):
    return ((n + m - 1) // m) * m


def _seq_tile(s, cap=256):
    # s is always a multiple of 128 here (padded token count)
    for t in (512, 256, 128):
        if t <= cap and s % t == 0:
            return t
    return s


def _layernorm(x, g, b, eps=1e-5):
    mu = jnp.mean(x, axis=-1, keepdims=True)
    var = jnp.mean(jnp.square(x - mu), axis=-1, keepdims=True)
    return (x - mu) * jax.lax.rsqrt(var + eps) * g + b


def _trunc_normal(key, shape, std=0.02):
    return std * jax.random.truncated_normal(key, -2.0, 2.0, shape, jnp.float32)


def extract_patches(videos, tubelet, patch):
    # [B,T,H,W,C] -> [B, N, C*t*P*P]; feature order (C, t, ph, pw) matches
    # Conv3d(stride=kernel) + flatten(2).transpose(1,2)
    B, T, H, W, C = videos.shape
    Tp, Hp, Wp = T // tubelet, H // patch, W // patch
    x = videos.reshape(B, Tp, tubelet, Hp, patch, Wp, patch, C)
    x = jnp.transpose(x, (0, 1, 3, 5, 7, 2, 4, 6))       # [B,Tp,Hp,Wp,C,t,P,P]
    return x.reshape(B, Tp * Hp * Wp, C * tubelet * patch * patch)


# ----------------------------------------------------------------------------
# Kernel 1: patch-embed matmul + norm_pre + cls token + pos embed (seq-tiled)
#   token layout: rows 0..N-1 = patches, row N = cls, rows N+1.. = zero pad.
# ----------------------------------------------------------------------------
def embed_kernel(patches_ref, w_ref, b_ref, g_ref, bb_ref, cls_ref, pos_ref,
                 out_ref, *, n_patches):
    t = pl.program_id(1)
    x = patches_ref[0]                                              # [TS, K] bf16
    ts = x.shape[0]
    y = jnp.dot(x, w_ref[...], preferred_element_type=jnp.float32) + b_ref[...]
    y = _layernorm(y, g_ref[...], bb_ref[...])                      # norm_pre (f32)
    row = jax.lax.broadcasted_iota(jnp.int32, (ts, 1), 0) + t * ts
    is_patch = row < n_patches
    is_cls = row == n_patches
    y = jnp.where(is_patch, y, jnp.where(is_cls, cls_ref[...], 0.0))
    out_ref[0] = (y + pos_ref[...].astype(jnp.float32)).astype(jnp.bfloat16)


def patch_embed_forward(patches_p, w, b, g, bb, cls_tok, pos_arr, *, n_patches):
    B, S, K = patches_p.shape
    E = w.shape[1]
    ts = _seq_tile(S)
    kernel = functools.partial(embed_kernel, n_patches=n_patches)
    return pl.pallas_call(
        kernel,
        out_shape=jax.ShapeDtypeStruct((B, S, E), jnp.bfloat16),
        grid=(B, S // ts),
        in_specs=[
            pl.BlockSpec((1, ts, K), lambda i, t: (i, t, 0)),
            pl.BlockSpec((K, E), lambda i, t: (0, 0)),
            pl.BlockSpec((1, E), lambda i, t: (0, 0)),
            pl.BlockSpec((1, E), lambda i, t: (0, 0)),
            pl.BlockSpec((1, E), lambda i, t: (0, 0)),
            pl.BlockSpec((1, E), lambda i, t: (0, 0)),
            pl.BlockSpec((ts, E), lambda i, t: (t, 0)),
        ],
        out_specs=pl.BlockSpec((1, ts, E), lambda i, t: (i, t, 0)),
        compiler_params=pltpu.CompilerParams(
            dimension_semantics=("parallel", "parallel"),
            vmem_limit_bytes=_VMEM_LIMIT),
    )(patches_p, w, b, g, bb, cls_tok, pos_arr)


# ----------------------------------------------------------------------------
# Kernel 2a: ln1 + fused QKV projection (qkv_bias=False); grid = (B, seq tiles)
# ----------------------------------------------------------------------------
def qkv_kernel(x_ref, g_ref, b_ref, w_ref, out_ref):
    xf = x_ref[0].astype(jnp.float32)
    h = _layernorm(xf, g_ref[...], b_ref[...]).astype(jnp.bfloat16)
    out_ref[0] = jnp.dot(h, w_ref[...],
                         preferred_element_type=jnp.float32).astype(jnp.bfloat16)


def qkv_forward(x, blk):
    B, S, E = x.shape
    E3 = blk["qkv_w"].shape[1]
    ts = _seq_tile(S)
    return pl.pallas_call(
        qkv_kernel,
        out_shape=jax.ShapeDtypeStruct((B, S, E3), jnp.bfloat16),
        grid=(B, S // ts),
        in_specs=[
            pl.BlockSpec((1, ts, E), lambda b, s: (b, s, 0)),
            pl.BlockSpec((1, E), lambda b, s: (0, 0)),
            pl.BlockSpec((1, E), lambda b, s: (0, 0)),
            pl.BlockSpec((E, E3), lambda b, s: (0, 0)),
        ],
        out_specs=pl.BlockSpec((1, ts, E3), lambda b, s: (b, s, 0)),
        compiler_params=pltpu.CompilerParams(
            dimension_semantics=("parallel", "parallel"),
            vmem_limit_bytes=_VMEM_LIMIT),
    )(x, blk["ln1_g"], blk["ln1_b"], blk["qkv_w"])


# ----------------------------------------------------------------------------
# Kernel 2b: q-tiled multi-head attention + output projection + residual.
#   grid = (B, q_tiles), both parallel.  K/V index only depends on b, so they
#   are fetched once per batch element and reused across q-tiles.  Each head
#   writes its [TQ, hd] output into a column panel of a [TQ, E] bf16 scratch;
#   one K=E output-projection matmul closes the step.
# ----------------------------------------------------------------------------
def attn_kernel(x_ref, q_ref, k_ref, v_ref, pw_ref, pb_ref, out_ref, buf_ref,
                *, scale, n_real, num_heads, hd):
    s_pad = k_ref.shape[2]
    # mask padded key columns (col >= n_real); hoisted out of the head loop
    col = jax.lax.broadcasted_iota(jnp.int32, (1, s_pad), 1)
    bias = jnp.where(col < n_real, 0.0, _NEG_INF).astype(jnp.float32)

    for h in range(num_heads):                           # static unroll
        q = q_ref[0, h]                                  # [TQ, hd]    bf16
        k = k_ref[0, h]                                  # [S_pad, hd] bf16
        v = v_ref[0, h]
        # q @ k^T without materializing a transpose
        s = jax.lax.dot_general(q, k, (((1,), (1,)), ((), ())),
                                preferred_element_type=jnp.float32) * scale + bias
        m = jnp.max(s, axis=-1, keepdims=True)
        # exp in bf16 (EUP bf16 on v6e/v7x; auto-widened on v5e); stats in f32
        p = jnp.exp((s - m).astype(jnp.bfloat16))
        l = jnp.sum(p.astype(jnp.float32), axis=-1, keepdims=True)
        o = jnp.dot(p, v, preferred_element_type=jnp.float32)       # [TQ, hd]
        o = o * pl.reciprocal(l, approx=True)
        buf_ref[:, h * hd:(h + 1) * hd] = o.astype(jnp.bfloat16)    # column panel

    y = jnp.dot(buf_ref[...], pw_ref[...],
                preferred_element_type=jnp.float32) + pb_ref[...]   # [TQ, E]
    out_ref[0] = (x_ref[0].astype(jnp.float32) + y).astype(jnp.bfloat16)


def attn_forward(x, q, k, v, blk, *, num_heads, n_real):
    B, S, E = x.shape
    hd = E // num_heads
    tq = _seq_tile(S)
    kernel = functools.partial(attn_kernel, scale=float(hd) ** -0.5,
                               n_real=n_real, num_heads=num_heads, hd=hd)
    return pl.pallas_call(
        kernel,
        out_shape=jax.ShapeDtypeStruct((B, S, E), jnp.bfloat16),
        grid=(B, S // tq),
        in_specs=[
            pl.BlockSpec((1, tq, E), lambda b, qi: (b, qi, 0)),           # residual x
            pl.BlockSpec((1, num_heads, tq, hd), lambda b, qi: (b, 0, qi, 0)),
            pl.BlockSpec((1, num_heads, S, hd), lambda b, qi: (b, 0, 0, 0)),
            pl.BlockSpec((1, num_heads, S, hd), lambda b, qi: (b, 0, 0, 0)),
            pl.BlockSpec((E, E), lambda b, qi: (0, 0)),                   # proj_w
            pl.BlockSpec((1, E), lambda b, qi: (0, 0)),                   # proj_b
        ],
        out_specs=pl.BlockSpec((1, tq, E), lambda b, qi: (b, qi, 0)),
        scratch_shapes=[pltpu.VMEM((tq, E), jnp.bfloat16)],               # head panels
        compiler_params=pltpu.CompilerParams(
            dimension_semantics=("parallel", "parallel"),
            vmem_limit_bytes=_VMEM_LIMIT),
    )(x, q, k, v, blk["proj_w"], blk["proj_b"])


# ----------------------------------------------------------------------------
# Kernel 2c: pre-LN MLP + residual; grid = (B, seq tiles), tiles capped at 256
# ----------------------------------------------------------------------------
def mlp_kernel(x_ref, g_ref, b_ref, w1_ref, b1_ref, w2_ref, b2_ref, out_ref):
    xf = x_ref[0].astype(jnp.float32)
    h = _layernorm(xf, g_ref[...], b_ref[...]).astype(jnp.bfloat16)
    h1 = jnp.dot(h, w1_ref[...], preferred_element_type=jnp.float32) + b1_ref[...]
    # TODO(synk): nn.GELU default is exact erf-GELU; using tanh approximation.
    h1 = jax.nn.gelu(h1, approximate=True)
    h2 = jnp.dot(h1.astype(jnp.bfloat16), w2_ref[...],
                 preferred_element_type=jnp.float32) + b2_ref[...]
    out_ref[0] = (xf + h2).astype(jnp.bfloat16)


def mlp_forward(x, blk):
    B, S, E = x.shape
    Hm = blk["fc1_w"].shape[1]
    ts = _seq_tile(S, cap=256)
    return pl.pallas_call(
        mlp_kernel,
        out_shape=jax.ShapeDtypeStruct((B, S, E), jnp.bfloat16),
        grid=(B, S // ts),
        in_specs=[
            pl.BlockSpec((1, ts, E), lambda b, s: (b, s, 0)),
            pl.BlockSpec((1, E), lambda b, s: (0, 0)),
            pl.BlockSpec((1, E), lambda b, s: (0, 0)),
            pl.BlockSpec((E, Hm), lambda b, s: (0, 0)),
            pl.BlockSpec((1, Hm), lambda b, s: (0, 0)),
            pl.BlockSpec((Hm, E), lambda b, s: (0, 0)),
            pl.BlockSpec((1, E), lambda b, s: (0, 0)),
        ],
        out_specs=pl.BlockSpec((1, ts, E), lambda b, s: (b, s, 0)),
        compiler_params=pltpu.CompilerParams(
            dimension_semantics=("parallel", "parallel"),
            vmem_limit_bytes=_VMEM_LIMIT),
    )(x, blk["ln2_g"], blk["ln2_b"], blk["fc1_w"], blk["fc1_b"],
      blk["fc2_w"], blk["fc2_b"])


def block_forward(x, blk, *, num_heads, n_real):
    B, S, E = x.shape
    hd = E // num_heads
    qkv = qkv_forward(x, blk)                                       # [B, S, 3E] bf16
    # head-major relayout (plain-JAX glue) so the attention kernel gets full-width
    # [S, hd] per-head panels without sub-lane BlockSpec slicing.
    qkv = jnp.transpose(qkv.reshape(B, S, 3, num_heads, hd), (2, 0, 3, 1, 4))
    x = attn_forward(x, qkv[0], qkv[1], qkv[2], blk,
                     num_heads=num_heads, n_real=n_real)
    x = mlp_forward(x, blk)
    return x


# ----------------------------------------------------------------------------
# Kernel 3: final norm (cls token) + task_projection + projector + normalize
# ----------------------------------------------------------------------------
def head_kernel(cls_ref, ng, nb, tw, tb, tlg, tlb, pw, pb, bng, bnb,
                feat_ref, proj_ref):
    x = _layernorm(cls_ref[...].astype(jnp.float32), ng[...], nb[...])   # [B, E]
    t = jnp.dot(x.astype(jnp.bfloat16), tw[...],
                preferred_element_type=jnp.float32) + tb[...]
    t = _layernorm(t, tlg[...], tlb[...])                                # task_projection
    feat_ref[...] = t
    p = jnp.dot(t.astype(jnp.bfloat16), pw[...],
                preferred_element_type=jnp.float32) + pb[...]
    # TODO(synk): BatchNorm1d eval mode with running_mean=0, running_var=1, eps=1e-5
    p = p * jax.lax.rsqrt(jnp.float32(1.0 + 1e-5)) * bng[...] + bnb[...]
    # F.normalize(dim=1)
    nrm2 = jnp.sum(jnp.square(p), axis=-1, keepdims=True)
    proj_ref[...] = p * jax.lax.rsqrt(jnp.maximum(nrm2, 1e-24))


def head_forward(cls_tok, params):
    B = cls_tok.shape[0]
    O = params["task_w"].shape[1]
    P = params["projr_w"].shape[1]
    vm = pl.BlockSpec(memory_space=pltpu.MemorySpace.VMEM)
    return pl.pallas_call(
        head_kernel,
        out_shape=(jax.ShapeDtypeStruct((B, O), jnp.float32),
                   jax.ShapeDtypeStruct((B, P), jnp.float32)),
        in_specs=[vm] * 11,
        out_specs=(vm, vm),
    )(cls_tok, params["norm_g"], params["norm_b"],
      params["task_w"], params["task_b"], params["task_ln_g"],
      params["task_ln_b"], params["projr_w"], params["projr_b"],
      params["bn_g"], params["bn_b"])


# ----------------------------------------------------------------------------
# full forward + deterministic parameter init
# ----------------------------------------------------------------------------
def init_params(key, *, embed_dim, depth, num_heads, mlp_ratio, patch_size,
                tubelet_size, output_dim, projection_dim, num_patches,
                in_chans=3):
    E = embed_dim
    K = in_chans * tubelet_size * patch_size * patch_size
    Hm = int(E * mlp_ratio)
    keys = iter(jax.random.split(key, 8 + 4 * depth))

    p = {}
    p["cls"] = _trunc_normal(next(keys), (1, E))
    p["pos"] = _trunc_normal(next(keys), (num_patches + 1, E))
    # Conv3d patch_embed: kaiming normal (fan_out, relu)
    fan_out = E * tubelet_size * patch_size * patch_size
    conv_w = jax.random.normal(next(keys), (E, K), jnp.float32) * jnp.sqrt(2.0 / fan_out)
    p["patch_w"] = conv_w.T.astype(jnp.bfloat16)                    # [K, E]
    p["patch_b"] = (jax.random.uniform(next(keys), (1, E), jnp.float32,
                                       -1.0, 1.0) / jnp.sqrt(float(K)))
    p["pre_g"] = jnp.ones((1, E), jnp.float32)
    p["pre_b"] = jnp.zeros((1, E), jnp.float32)

    blocks = []
    for _ in range(depth):
        blk = {
            "ln1_g": jnp.ones((1, E), jnp.float32),
            "ln1_b": jnp.zeros((1, E), jnp.float32),
            # fused qkv weight, column order (3, heads, head_dim); qkv_bias=False
            "qkv_w": _trunc_normal(next(keys), (E, 3 * E)).astype(jnp.bfloat16),
            "proj_w": _trunc_normal(next(keys), (E, E)).astype(jnp.bfloat16),
            "proj_b": jnp.zeros((1, E), jnp.float32),
            "ln2_g": jnp.ones((1, E), jnp.float32),
            "ln2_b": jnp.zeros((1, E), jnp.float32),
            "fc1_w": _trunc_normal(next(keys), (E, Hm)).astype(jnp.bfloat16),
            "fc1_b": jnp.zeros((1, Hm), jnp.float32),
            "fc2_w": _trunc_normal(next(keys), (Hm, E)).astype(jnp.bfloat16),
            "fc2_b": jnp.zeros((1, E), jnp.float32),
        }
        blocks.append(blk)
    p["blocks"] = blocks

    p["norm_g"] = jnp.ones((1, E), jnp.float32)
    p["norm_b"] = jnp.zeros((1, E), jnp.float32)
    p["task_w"] = _trunc_normal(next(keys), (E, output_dim)).astype(jnp.bfloat16)
    p["task_b"] = jnp.zeros((1, output_dim), jnp.float32)
    p["task_ln_g"] = jnp.ones((1, output_dim), jnp.float32)
    p["task_ln_b"] = jnp.zeros((1, output_dim), jnp.float32)
    p["projr_w"] = _trunc_normal(next(keys),
                                 (output_dim, projection_dim)).astype(jnp.bfloat16)
    p["projr_b"] = jnp.zeros((1, projection_dim), jnp.float32)
    p["bn_g"] = jnp.ones((1, projection_dim), jnp.float32)
    p["bn_b"] = jnp.zeros((1, projection_dim), jnp.float32)
    return p


def video_mae_forward(videos, params, *, num_heads, tubelet_size, patch_size):
    patches = extract_patches(videos, tubelet_size, patch_size).astype(jnp.bfloat16)
    B, N, K = patches.shape
    n_real = N + 1                                   # patches + cls token
    s_pad = _round_up(n_real, 128)                   # lane-dense padded token count

    # zero-pad patch rows up to the padded token count (cls row + pad rows are
    # overwritten / zeroed inside the embed kernel)
    patches_p = jnp.pad(patches, ((0, 0), (0, s_pad - N), (0, 0)))

    # token layout: rows 0..N-1 = patches, row N = cls, rows N+1.. = pad.
    # pos rows reordered accordingly (cls pos last among real tokens).
    pos = params["pos"]
    pos_arr = jnp.concatenate([pos[1:], pos[:1]], axis=0)           # [N+1, E]
    pos_arr = jnp.pad(pos_arr, ((0, s_pad - n_real), (0, 0))).astype(jnp.bfloat16)

    # norm_pre is applied to patch tokens only, before cls concat + pos add
    # (matches the reference forward_encoder ordering exactly).
    x = patch_embed_forward(patches_p, params["patch_w"], params["patch_b"],
                            params["pre_g"], params["pre_b"], params["cls"],
                            pos_arr, n_patches=N)

    for blk in params["blocks"]:
        x = block_forward(x, blk, num_heads=num_heads, n_real=n_real)

    cls_tok = x[:, N, :]                                            # glue
    task_features, projections = head_forward(cls_tok, params)
    # eval branch of forward(): (task_features, projections, None)
    return task_features, projections


# ----------------------------------------------------------------------------
if __name__ == "__main__":
    key = jax.random.PRNGKey(0)
    pkey, vkey = jax.random.split(key)

    # small, forward-consistent shapes
    B, T, H, W, C = 2, 4, 16, 16, 3
    cfg = dict(embed_dim=64, depth=2, num_heads=4, mlp_ratio=4.0,
               patch_size=8, tubelet_size=2, output_dim=32, projection_dim=16)
    num_patches = (T // cfg["tubelet_size"]) * (H // cfg["patch_size"]) * (
        W // cfg["patch_size"])

    params = init_params(pkey, num_patches=num_patches, **cfg)
    videos = jax.random.normal(vkey, (B, T, H, W, C), jnp.float32)

    task_features, projections = video_mae_forward(
        videos, params, num_heads=cfg["num_heads"],
        tubelet_size=cfg["tubelet_size"], patch_size=cfg["patch_size"])
    jax.block_until_ready((task_features, projections))

    assert task_features.shape == (B, cfg["output_dim"])
    assert projections.shape == (B, cfg["projection_dim"])
    assert bool(jnp.all(jnp.isfinite(task_features)))
    assert bool(jnp.all(jnp.isfinite(projections)))
    print("KERNEL_OK")
</pallas_src>

<mosaic_0001>
module attributes {stable_mosaic.version = 11 : i64} {
  func.func @embed_kernel(%arg0: i32, %arg1: i32, %arg2: memref<1x128x384xbf16, #tpu.memory_space<vmem>>, %arg3: memref<384x64xbf16, #tpu.memory_space<vmem>>, %arg4: memref<1x64xf32, #tpu.memory_space<vmem>>, %arg5: memref<1x64xf32, #tpu.memory_space<vmem>>, %arg6: memref<1x64xf32, #tpu.memory_space<vmem>>, %arg7: memref<1x64xf32, #tpu.memory_space<vmem>>, %arg8: memref<128x64xbf16, #tpu.memory_space<vmem>>, %arg9: memref<1x128x64xbf16, #tpu.memory_space<vmem>>) attributes {dimension_semantics = [#tpu.dimension_semantics<parallel>, #tpu.dimension_semantics<parallel>], iteration_bounds = array<i64: 2, 1>, scalar_prefetch = 0 : i64, scratch_operands = 0 : i64, tpu.core_type = #tpu.core_type<tc>, window_params = [{transform_indices = @transform_0, window_bounds = array<i64: 1, 128, 384>}, {pipeline_mode = #tpu.pipeline_mode<synchronous>, transform_indices = @transform_1, window_bounds = array<i64: 384, 64>}, {pipeline_mode = #tpu.pipeline_mode<synchronous>, transform_indices = @transform_2, window_bounds = array<i64: 1, 64>}, {pipeline_mode = #tpu.pipeline_mode<synchronous>, transform_indices = @transform_3, window_bounds = array<i64: 1, 64>}, {pipeline_mode = #tpu.pipeline_mode<synchronous>, transform_indices = @transform_4, window_bounds = array<i64: 1, 64>}, {pipeline_mode = #tpu.pipeline_mode<synchronous>, transform_indices = @transform_5, window_bounds = array<i64: 1, 64>}, {transform_indices = @transform_6, window_bounds = array<i64: 128, 64>}, {transform_indices = @transform_7, window_bounds = array<i64: 1, 128, 64>}]} {
    %c0 = arith.constant 0 : index
    %c0_0 = arith.constant 0 : index
    %c0_1 = arith.constant 0 : index
    %0 = vector.load %arg2[%c0, %c0_0, %c0_1] : memref<1x128x384xbf16, #tpu.memory_space<vmem>>, vector<1x128x384xbf16>
    %1 = vector.shape_cast %0 : vector<1x128x384xbf16> to vector<128x384xbf16>
    %c0_2 = arith.constant 0 : index
    %c0_3 = arith.constant 0 : index
    %2 = vector.load %arg3[%c0_2, %c0_3] : memref<384x64xbf16, #tpu.memory_space<vmem>>, vector<384x64xbf16>
    %cst = arith.constant dense<0.000000e+00> : vector<128x64xf32>
    %3 = tpu.matmul %1, %2, %cst {dimension_numbers = #tpu.dot_dimension_numbers<[1], [0], [0], [1], [0, 0, 1, 1], [], []>} : vector<128x384xbf16>, vector<384x64xbf16>, vector<128x64xf32> -> vector<128x64xf32>
    %c0_4 = arith.constant 0 : index
    %c0_5 = arith.constant 0 : index
    %4 = vector.load %arg4[%c0_4, %c0_5] : memref<1x64xf32, #tpu.memory_space<vmem>>, vector<1x64xf32>
    %5 = vector.broadcast %4 : vector<1x64xf32> to vector<128x64xf32>
    %6 = arith.addf %3, %5 : vector<128x64xf32>
    %c0_6 = arith.constant 0 : index
    %c0_7 = arith.constant 0 : index
    %7 = vector.load %arg5[%c0_6, %c0_7] : memref<1x64xf32, #tpu.memory_space<vmem>>, vector<1x64xf32>
    %c0_8 = arith.constant 0 : index
    %c0_9 = arith.constant 0 : index
    %8 = vector.load %arg6[%c0_8, %c0_9] : memref<1x64xf32, #tpu.memory_space<vmem>>, vector<1x64xf32>
    %cst_10 = arith.constant dense<0.000000e+00> : vector<128xf32>
    %9 = vector.multi_reduction <add>, %6, %cst_10 [1] : vector<128x64xf32> to vector<128xf32>
    %10 = vector.shape_cast %9 : vector<128xf32> to vector<128x1xf32>
    %cst_11 = arith.constant 6.400000e+01 : f32
    %11 = vector.broadcast %cst_11 : f32 to vector<128x1xf32>
    %12 = arith.divf %10, %11 : vector<128x1xf32>
    %13 = vector.broadcast %12 : vector<128x1xf32> to vector<128x64xf32>
    %14 = arith.subf %6, %13 : vector<128x64xf32>
    %15 = arith.mulf %14, %14 : vector<128x64xf32>
    %cst_12 = arith.constant dense<0.000000e+00> : vector<128xf32>
    %16 = vector.multi_reduction <add>, %15, %cst_12 [1] : vector<128x64xf32> to vector<128xf32>
    %17 = vector.shape_cast %16 : vector<128xf32> to vector<128x1xf32>
    %cst_13 = arith.constant 6.400000e+01 : f32
    %18 = vector.broadcast %cst_13 : f32 to vector<128x1xf32>
    %19 = arith.divf %17, %18 : vector<128x1xf32>
    %20 = vector.broadcast %12 : vector<128x1xf32> to vector<128x64xf32>
    %21 = arith.subf %6, %20 : vector<128x64xf32>
    %cst_14 = arith.constant 9.99999974E-6 : f32
    %22 = vector.broadcast %cst_14 : f32 to vector<128x1xf32>
    %23 = arith.addf %19, %22 : vector<128x1xf32>
    %24 = math.rsqrt %23 : vector<128x1xf32>
    %25 = vector.broadcast %24 : vector<128x1xf32> to vector<128x64xf32>
    %26 = arith.mulf %21, %25 : vector<128x64xf32>
    %27 = vector.broadcast %7 : vector<1x64xf32> to vector<128x64xf32>
    %28 = arith.mulf %26, %27 : vector<128x64xf32>
    %29 = vector.broadcast %8 : vector<1x64xf32> to vector<128x64xf32>
    %30 = arith.addf %28, %29 : vector<128x64xf32>
    %31 = tpu.iota {dimensions = array<i32: 0>} : vector<128x1xi32>
    %c128_i32 = arith.constant 128 : i32
    %32 = arith.muli %arg1, %c128_i32 : i32
    %33 = vector.broadcast %32 : i32 to vector<128x1xi32>
    %34 = arith.addi %31, %33 : vector<128x1xi32>
    %c8_i32 = arith.constant 8 : i32
    %35 = vector.broadcast %c8_i32 : i32 to vector<128x1xi32>
    %36 = arith.cmpi slt, %34, %35 : vector<128x1xi32>
    %c8_i32_15 = arith.constant 8 : i32
    %37 = vector.broadcast %c8_i32_15 : i32 to vector<128x1xi32>
    %38 = arith.cmpi eq, %34, %37 : vector<128x1xi32>
    %c0_16 = arith.constant 0 : index
    %c0_17 = arith.constant 0 : index
    %39 = vector.load %arg7[%c0_16, %c0_17] : memref<1x64xf32, #tpu.memory_space<vmem>>, vector<1x64xf32>
    %cst_18 = arith.constant 0.000000e+00 : f32
    %40 = vector.shape_cast %38 : vector<128x1xi1> to vector<128x1xi1>
    %41 = vector.broadcast %40 : vector<128x1xi1> to vector<128x64xi1>
    %42 = vector.shape_cast %39 : vector<1x64xf32> to vector<1x64xf32>
    %43 = vector.broadcast %42 : vector<1x64xf32> to vector<128x64xf32>
    %44 = vector.broadcast %cst_18 : f32 to vector<128x64xf32>
    %45 = arith.select %41, %43, %44 : vector<128x64xi1>, vector<128x64xf32>
    %46 = vector.shape_cast %36 : vector<128x1xi1> to vector<128x1xi1>
    %47 = vector.broadcast %46 : vector<128x1xi1> to vector<128x64xi1>
    %48 = arith.select %47, %30, %45 : vector<128x64xi1>, vector<128x64xf32>
    %c0_19 = arith.constant 0 : index
    %c0_20 = arith.constant 0 : index
    %49 = vector.load %arg8[%c0_19, %c0_20] : memref<128x64xbf16, #tpu.memory_space<vmem>>, vector<128x64xbf16>
    %50 = arith.extf %49 : vector<128x64xbf16> to vector<128x64xf32>
    %51 = arith.addf %48, %50 : vector<128x64xf32>
    %52 = arith.truncf %51 : vector<128x64xf32> to vector<128x64xbf16>
    %c0_21 = arith.constant 0 : index
    %c0_22 = arith.constant 0 : index
    %c0_23 = arith.constant 0 : index
    %53 = vector.load %arg9[%c0_21, %c0_22, %c0_23] : memref<1x128x64xbf16, #tpu.memory_space<vmem>>, vector<1x128x64xbf16>
    %54 = vector.shape_cast %53 : vector<1x128x64xbf16> to vector<128x64xbf16>
    %55 = vector.shape_cast %52 : vector<128x64xbf16> to vector<1x128x64xbf16>
    tpu.vector_store %arg9[%c0_21, %c0_22, %c0_23], %55 {strides = array<i32>} : memref<1x128x64xbf16, #tpu.memory_space<vmem>>, vector<1x128x64xbf16>,
    return
  }
  func.func @transform_0(%arg0: i32, %arg1: i32) -> (i32, i32, i32) {
    %c0_i32 = arith.constant 0 : i32
    %c0_i32_0 = arith.constant 0 : i32
    return %arg0, %arg1, %c0_i32 : i32, i32, i32
  }
  func.func @transform_1(%arg0: i32, %arg1: i32) -> (i32, i32) {
    %c0_i32 = arith.constant 0 : i32
    %c0_i32_0 = arith.constant 0 : i32
    %c0_i32_1 = arith.constant 0 : i32
    return %c0_i32, %c0_i32_0 : i32, i32
  }
  func.func @transform_2(%arg0: i32, %arg1: i32) -> (i32, i32) {
    %c0_i32 = arith.constant 0 : i32
    %c0_i32_0 = arith.constant 0 : i32
    %c0_i32_1 = arith.constant 0 : i32
    return %c0_i32, %c0_i32_0 : i32, i32
  }
  func.func @transform_3(%arg0: i32, %arg1: i32) -> (i32, i32) {
    %c0_i32 = arith.constant 0 : i32
    %c0_i32_0 = arith.constant 0 : i32
    %c0_i32_1 = arith.constant 0 : i32
    return %c0_i32, %c0_i32_0 : i32, i32
  }
  func.func @transform_4(%arg0: i32, %arg1: i32) -> (i32, i32) {
    %c0_i32 = arith.constant 0 : i32
    %c0_i32_0 = arith.constant 0 : i32
    %c0_i32_1 = arith.constant 0 : i32
    return %c0_i32, %c0_i32_0 : i32, i32
  }
  func.func @transform_5(%arg0: i32, %arg1: i32) -> (i32, i32) {
    %c0_i32 = arith.constant 0 : i32
    %c0_i32_0 = arith.constant 0 : i32
    %c0_i32_1 = arith.constant 0 : i32
    return %c0_i32, %c0_i32_0 : i32, i32
  }
  func.func @transform_6(%arg0: i32, %arg1: i32) -> (i32, i32) {
    %c0_i32 = arith.constant 0 : i32
    %c0_i32_0 = arith.constant 0 : i32
    return %arg1, %c0_i32 : i32, i32
  }
  func.func @transform_7(%arg0: i32, %arg1: i32) -> (i32, i32, i32) {
    %c0_i32 = arith.constant 0 : i32
    %c0_i32_0 = arith.constant 0 : i32
    return %arg0, %arg1, %c0_i32 : i32, i32, i32
  }
}

</mosaic_0001>

<llo_original>
// kernel: tpu_custom_call.1
$region0: #{tpu_custom_call.1}
  #allocation0 [shape = 'u32[]', space=smem, size = 0x4, offset = 0x4, fixed_abs, tag = 'smem constant byte address 0x4 - core index']
  #allocation1 [shape = 'u32[144,128]{1,0:T(1,128)}', space=vmem, size = 0x12000, scoped, tag = 'internal scratch']
  %s0 = inlined_call_operand.vmem [shape: bf16[2,128,384], index: 0, kind: input, shape index: {}]
  %s1 = inlined_call_operand.vmem [shape: bf16[384,64], index: 1, kind: input, shape index: {}]
  %s2 = inlined_call_operand.vmem [shape: f32[1,64], index: 2, kind: input, shape index: {}]
  %s3 = inlined_call_operand.vmem [shape: f32[1,64], index: 3, kind: input, shape index: {}]
  %s4 = inlined_call_operand.vmem [shape: f32[1,64], index: 4, kind: input, shape index: {}]
  %s5 = inlined_call_operand.vmem [shape: f32[1,64], index: 5, kind: input, shape index: {}]
  %s6 = inlined_call_operand.vmem [shape: bf16[128,64], index: 6, kind: input, shape index: {}]
  %s7 = inlined_call_operand.vmem [shape: bf16[2,128,64], index: 7, kind: output, shape index: {}]
  %s8 = sld [smem:[#allocation0]]
  $region61: #{tpu_custom_call.1} parent=0
    _
  %s10 = ssub.s32 1, %s8
  %s11 = scalar_select 0, %s10, %s8
  loop: start=0, step=1, limit=4
  $region2: #{tpu_custom_call.1} parent=0 // loop_pre_header
    _
  $region3: #{tpu_custom_call.1} parent=0 // loop_header
    %s13 = sphi 0, %s17
    %p14 = scmp.ge.s32.totalorder %s13, 4
    %s20 = sphi 0, %s32
    %s21 = sphi 0, %s28
    %s22 = sphi 0, %s20
    %s23 = sphi 0, %s21
    %s24 = sphi 0, %s22
    %s25 = sphi 0, %s23
    %s37 = sphi 0, %s39
    %s40 = sphi 0, %s37
    %s41 = sphi 0, %s40
    %s57 = sphi 0, %s41
    %s61 = sphi 0, %s61
    %s63 = sphi 0, %s61
    %s64 = sphi 0, %s63
    %s78 = sphi 0, %s64
    %s82 = sphi 0, %s82
    %s84 = sphi 0, %s82
    %s85 = sphi 0, %s84
    %s99 = sphi 0, %s85
    %s103 = sphi 0, %s103
    %s105 = sphi 0, %s103
    %s106 = sphi 0, %s105
    %s120 = sphi 0, %s106
    %s124 = sphi 0, %s124
    %s126 = sphi 0, %s124
    %s127 = sphi 0, %s126
    %s141 = sphi 0, %s127
    %s145 = sphi 0, %s145
    %s147 = sphi 0, %s145
    %s148 = sphi 0, %s147
    %s162 = sphi 0, %s148
    %s168 = sphi 0, %s170
    %s171 = sphi 0, %s168
    %s172 = sphi 0, %s171
    %s188 = sphi 0, %s172
    %s196 = sphi 0, %s198
    %s199 = sphi 0, %s196
    %s200 = sphi 0, %s199
    %s216 = sphi 0, %s200
  $region4: #{tpu_custom_call.1} parent=0 // loop_header_branch
    %16 = sbr.rel (%p14) target = $region8
  $region5: #{tpu_custom_call.1} parent=0 // loop_body
    %s18 = ssub.s32 %s13, 1
    %s19 = ssub.s32 %s13, 2
    %s26 = sadd.s32 1, %s21
    %p27 = scmp.ge.s32.totalorder %s26, 1
    %s28 = scalar_select %p27, 0, %s26
    %s29 = sadd.s32 1, %s20
    %s30 = scalar_select %p27, %s29, %s20
    %p31 = scmp.ge.s32.totalorder %s30, 2
    %s32 = scalar_select %p31, 0, %s30
    %s33 = ssub.s32 %s20, %s32
    %s34 = ssub.s32 %s21, %s28
    %s35 = sor.u32 %s33, %s34
    %p36 = scmp.eq.s32.totalorder %s35, 0
    %s38 = sadd.s32 %s37, 1
    %s39 = scalar_select %p36, %s37, %s38
    %p42 = pneg %p36
    %p43 = scmp.eq.s32.totalorder %s13, 1
    %p44 = por %p42, %p43
    %p45 = scmp.ne.s32.totalorder %s37, %s40
    %p46 = scmp.eq.s32.totalorder %s13, 0
    %p47 = por %p45, %p46
    %p48 = scmp.ne.s32.totalorder %s37, %s40
    %p49 = scmp.eq.s32.totalorder %s18, 1
    %p50 = por %p48, %p49
    %p51 = scmp.ne.s32.totalorder %s40, %s41
    %p52 = scmp.eq.s32.totalorder %s18, 0
    %p53 = por %p51, %p52
    %p54 = scmp.ne.s32.totalorder %s40, %s41
    %p55 = scmp.eq.s32.totalorder %s19, 1
    %p56 = por %p54, %p55
    %p58 = scmp.ne.s32.totalorder %s41, %s57
    %p59 = scmp.eq.s32.totalorder %s19, 0
    %p60 = por %p58, %p59
    %s62 = sadd.s32 %s61, 1
    %p65 = scmp.eq.s32.totalorder %s13, 1
    %p66 = scmp.ne.s32.totalorder %s61, %s63
    %p67 = scmp.eq.s32.totalorder %s13, 0
    %p68 = por %p66, %p67
    %p69 = scmp.ne.s32.totalorder %s61, %s63
    %p70 = scmp.eq.s32.totalorder %s18, 1
    %p71 = por %p69, %p70
    %p72 = scmp.ne.s32.totalorder %s63, %s64
    %p73 = scmp.eq.s32.totalorder %s18, 0
    %p74 = por %p72, %p73
    %p75 = scmp.ne.s32.totalorder %s63, %s64
    %p76 = scmp.eq.s32.totalorder %s19, 1
    %p77 = por %p75, %p76
    %p79 = scmp.ne.s32.totalorder %s64, %s78
    %p80 = scmp.eq.s32.totalorder %s19, 0
    %p81 = por %p79, %p80
    %s83 = sadd.s32 %s82, 1
    %p86 = scmp.eq.s32.totalorder %s13, 1
    %p87 = scmp.ne.s32.totalorder %s82, %s84
    %p88 = scmp.eq.s32.totalorder %s13, 0
    %p89 = por %p87, %p88
    %p90 = scmp.ne.s32.totalorder %s82, %s84
    %p91 = scmp.eq.s32.totalorder %s18, 1
    %p92 = por %p90, %p91
    %p93 = scmp.ne.s32.totalorder %s84, %s85
    %p94 = scmp.eq.s32.totalorder %s18, 0
    %p95 = por %p93, %p94
    %p96 = scmp.ne.s32.totalorder %s84, %s85
    %p97 = scmp.eq.s32.totalorder %s19, 1
    %p98 = por %p96, %p97
    %p100 = scmp.ne.s32.totalorder %s85, %s99
    %p101 = scmp.eq.s32.totalorder %s19, 0
    %p102 = por %p100, %p101
    %s104 = sadd.s32 %s103, 1
    %p107 = scmp.eq.s32.totalorder %s13, 1
    %p108 = scmp.ne.s32.totalorder %s103, %s105
    %p109 = scmp.eq.s32.totalorder %s13, 0
    %p110 = por %p108, %p109
    %p111 = scmp.ne.s32.totalorder %s103, %s105
    %p112 = scmp.eq.s32.totalorder %s18, 1
    %p113 = por %p111, %p112
    %p114 = scmp.ne.s32.totalorder %s105, %s106
    %p115 = scmp.eq.s32.totalorder %s18, 0
    %p116 = por %p114, %p115
    %p117 = scmp.ne.s32.totalorder %s105, %s106
    %p118 = scmp.eq.s32.totalorder %s19, 1
    %p119 = por %p117, %p118
    %p121 = scmp.ne.s32.totalorder %s106, %s120
    %p122 = scmp.eq.s32.totalorder %s19, 0
    %p123 = por %p121, %p122
    %s125 = sadd.s32 %s124, 1
    %p128 = scmp.eq.s32.totalorder %s13, 1
    %p129 = scmp.ne.s32.totalorder %s124, %s126
    %p130 = scmp.eq.s32.totalorder %s13, 0
    %p131 = por %p129, %p130
    %p132 = scmp.ne.s32.totalorder %s124, %s126
    %p133 = scmp.eq.s32.totalorder %s18, 1
    %p134 = por %p132, %p133
    %p135 = scmp.ne.s32.totalorder %s126, %s127
    %p136 = scmp.eq.s32.totalorder %s18, 0
    %p137 = por %p135, %p136
    %p138 = scmp.ne.s32.totalorder %s126, %s127
    %p139 = scmp.eq.s32.totalorder %s19, 1
    %p140 = por %p138, %p139
    %p142 = scmp.ne.s32.totalorder %s127, %s141
    %p143 = scmp.eq.s32.totalorder %s19, 0
    %p144 = por %p142, %p143
    %s146 = sadd.s32 %s145, 1
    %p149 = scmp.eq.s32.totalorder %s13, 1
    %p150 = scmp.ne.s32.totalorder %s145, %s147
    %p151 = scmp.eq.s32.totalorder %s13, 0
    %p152 = por %p150, %p151
    %p153 = scmp.ne.s32.totalorder %s145, %s147
    %p154 = scmp.eq.s32.totalorder %s18, 1
    %p155 = por %p153, %p154
    %p156 = scmp.ne.s32.totalorder %s147, %s148
    %p157 = scmp.eq.s32.totalorder %s18, 0
    %p158 = por %p156, %p157
    %p159 = scmp.ne.s32.totalorder %s147, %s148
    %p160 = scmp.eq.s32.totalorder %s19, 1
    %p161 = por %p159, %p160
    %p163 = scmp.ne.s32.totalorder %s148, %s162
    %p164 = scmp.eq.s32.totalorder %s19, 0
    %p165 = por %p163, %p164
    %s166 = ssub.s32 %s21, %s28
    %p167 = scmp.eq.s32.totalorder %s166, 0
    %s169 = sadd.s32 %s168, 1
    %s170 = scalar_select %p167, %s168, %s169
    %p173 = pneg %p167
    %p174 = scmp.eq.s32.totalorder %s13, 1
    %p175 = por %p173, %p174
    %p176 = scmp.ne.s32.totalorder %s168, %s171
    %p177 = scmp.eq.s32.totalorder %s13, 0
    %p178 = por %p176, %p177
    %p179 = scmp.ne.s32.totalorder %s168, %s171
    %p180 = scmp.eq.s32.totalorder %s18, 1
    %p181 = por %p179, %p180
    %p182 = scmp.ne.s32.totalorder %s171, %s172
    %p183 = scmp.eq.s32.totalorder %s18, 0
    %p184 = por %p182, %p183
    %p185 = scmp.ne.s32.totalorder %s171, %s172
    %p186 = scmp.eq.s32.totalorder %s19, 1
    %p187 = por %p185, %p186
    %p189 = scmp.ne.s32.totalorder %s172, %s188
    %p190 = scmp.eq.s32.totalorder %s19, 0
    %p191 = por %p189, %p190
    %s192 = ssub.s32 %s20, %s32
    %s193 = ssub.s32 %s21, %s28
    %s194 = sor.u32 %s192, %s193
    %p195 = scmp.eq.s32.totalorder %s194, 0
    %s197 = sadd.s32 %s196, 1
    %s198 = scalar_select %p195, %s196, %s197
    %p201 = pneg %p195
    %p202 = scmp.eq.s32.totalorder %s13, 1
    %p203 = por %p201, %p202
    %p204 = scmp.ne.s32.totalorder %s196, %s199
    %p205 = scmp.eq.s32.totalorder %s13, 0
    %p206 = por %p204, %p205
    %p207 = scmp.ne.s32.totalorder %s196, %s199
    %p208 = scmp.eq.s32.totalorder %s18, 1
    %p209 = por %p207, %p208
    %p210 = scmp.ne.s32.totalorder %s199, %s200
    %p211 = scmp.eq.s32.totalorder %s18, 0
    %p212 = por %p210, %p211
    %p213 = scmp.ne.s32.totalorder %s199, %s200
    %p214 = scmp.eq.s32.totalorder %s19, 1
    %p215 = por %p213, %p214
    %p217 = scmp.ne.s32.totalorder %s200, %s216
    %p218 = scmp.eq.s32.totalorder %s19, 0
    %p219 = por %p217, %p218
    %p220 = scmp.le.s32.totalorder 1, %s13
    %p221 = scmp.lt.s32.totalorder %s13, 3
    %p222 = pnand %p220, %p221
    %p223 = pneg %p222
    // Predicated region
    $region9: #{tpu_custom_call.1} parent=5 // pred_check
      _
    $region10: #{tpu_custom_call.1} parent=5 // pred_check_branch
      %225 = sbr.rel (%p222) target = $region12
    $region11: #{tpu_custom_call.1} parent=5 // pred_region
      %s226 = ssub.s32 %s13, 1
      // Predicated region
      $region13: #{tpu_custom_call.1} parent=11 // pred_check
        %p227 = pneg %p74
      $region14: #{tpu_custom_call.1} parent=11 // pred_check_branch
        %229 = sbr.rel (%p227) target = $region16
      $region15: #{tpu_custom_call.1} parent=11 // pred_region
        _
      $region16: #{tpu_custom_call.1} parent=11 // pred_fallthru
        _
      // Predicated region
      $region17: #{tpu_custom_call.1} parent=11 // pred_check
        %p230 = pneg %p95
      $region18: #{tpu_custom_call.1} parent=11 // pred_check_branch
        %232 = sbr.rel (%p230) target = $region20
      $region19: #{tpu_custom_call.1} parent=11 // pred_region
        _
      $region20: #{tpu_custom_call.1} parent=11 // pred_fallthru
        _
      // Predicated region
      $region21: #{tpu_custom_call.1} parent=11 // pred_check
        %p233 = pneg %p116
      $region22: #{tpu_custom_call.1} parent=11 // pred_check_branch
        %235 = sbr.rel (%p233) target = $region24
      $region23: #{tpu_custom_call.1} parent=11 // pred_region
        _
      $region24: #{tpu_custom_call.1} parent=11 // pred_fallthru
        _
      // Predicated region
      $region25: #{tpu_custom_call.1} parent=11 // pred_check
        %p236 = pneg %p137
      $region26: #{tpu_custom_call.1} parent=11 // pred_check_branch
        %238 = sbr.rel (%p236) target = $region28
      $region27: #{tpu_custom_call.1} parent=11 // pred_region
        _
      $region28: #{tpu_custom_call.1} parent=11 // pred_fallthru
        _
      // Predicated region
      $region29: #{tpu_custom_call.1} parent=11 // pred_check
        %p239 = pneg %p158
      $region30: #{tpu_custom_call.1} parent=11 // pred_check_branch
        %241 = sbr.rel (%p239) target = $region32
      $region31: #{tpu_custom_call.1} parent=11 // pred_region
        _
      $region32: #{tpu_custom_call.1} parent=11 // pred_fallthru
        _
      // Predicated region
      $region33: #{tpu_custom_call.1} parent=11 // pred_check
        %p242 = pneg %p184
      $region34: #{tpu_custom_call.1} parent=11 // pred_check_branch
        %244 = sbr.rel (%p242) target = $region36
      $region35: #{tpu_custom_call.1} parent=11 // pred_region
        %s245 = smul.u32 16, %s23
        %p246 = scmp.lt.s32.totalorder %s245, 15
        %s247 = scalar_select %p246, %s245, 15
        %s248 = smul.addr %s247, 4
        %s249 = scalar_lea.vmem %s6, %s248
        %s250 = smul.u32 16, %s23
      $region36: #{tpu_custom_call.1} parent=11 // pred_fallthru
        _
    $region12: #{tpu_custom_call.1} parent=5 // pred_fallthru
      _
    %p251 = scmp.lt.s32.totalorder %s13, 2
    // Predicated region
    $region37: #{tpu_custom_call.1} parent=5 // pred_check
      %p252 = pneg %p251
    $region38: #{tpu_custom_call.1} parent=5 // pred_check_branch
      %254 = sbr.rel (%p252) target = $region40
    $region39: #{tpu_custom_call.1} parent=5 // pred_region
      // Predicated region
      $region41: #{tpu_custom_call.1} parent=39 // pred_check
        %p255 = pneg %p47
      $region42: #{tpu_custom_call.1} parent=39 // pred_check_branch
        %257 = sbr.rel (%p255) target = $region44
      $region43: #{tpu_custom_call.1} parent=39 // pred_region
        %s258 = smul.u32 16, %s21
        %p259 = scmp.lt.s32.totalorder %s20, 1
        %s260 = scalar_select %p259, %s20, 1
        %p261 = scmp.lt.s32.totalorder %s258, 15
        %s262 = scalar_select %p261, %s258, 15
        %s263 = smul.addr %s262, 3
        %s264 = smul.addr %s260, 48
        %s265 = sadd.s32 %s263, %s264
        %s266 = smul.addr %s265, 4
        %s267 = scalar_lea.vmem %s0, %s266
        %s268 = smul.u32 16, %s21
      $region44: #{tpu_custom_call.1} parent=39 // pred_fallthru
        _
    $region40: #{tpu_custom_call.1} parent=5 // pred_fallthru
      _
    %p269 = scmp.le.s32.totalorder 1, %s13
    %p270 = scmp.lt.s32.totalorder %s13, 3
    %p271 = pnand %p269, %p270
    %p272 = pneg %p271
    // Predicated region
    $region45: #{tpu_custom_call.1} parent=5 // pred_check
      _
    $region46: #{tpu_custom_call.1} parent=5 // pred_check_branch
      %274 = sbr.rel (%p271) target = $region48
    $region47: #{tpu_custom_call.1} parent=5 // pred_region
      %s275 = ssub.s32 %s13, 1
      %s276 = smul.u32 16, %s23
      %p277 = scmp.lt.s32.totalorder %s22, 1
      %s278 = scalar_select %p277, %s22, 1
      %p279 = scmp.lt.s32.totalorder %s276, 15
      %s280 = scalar_select %p279, %s276, 15
      %s281 = smul.addr %s280, 3
      %s282 = smul.addr %s278, 48
      %s283 = sadd.s32 %s281, %s282
      %s284 = smul.addr %s283, 4
      %s285 = scalar_lea.vmem %s0, %s284
      %p286 = pneg %p53
      %p287 = pneg %p50
      %p288 = pneg %p74
      %p289 = pneg %p71
      %p290 = pneg %p95
      %p291 = pneg %p92
      %p292 = pneg %p116
      %p293 = pneg %p113
      %p294 = pneg %p137
      %p295 = pneg %p134
      %p296 = pneg %p158
      %p297 = pneg %p155
      %s298 = smul.u32 16, %s23
      %p299 = scmp.lt.s32.totalorder %s298, 15
      %s300 = scalar_select %p299, %s298, 15
      %s301 = smul.addr %s300, 4
      %s302 = scalar_lea.vmem %s6, %s301
      %p303 = pneg %p184
      %p304 = pneg %p181
      %p305 = pneg %p212
      %p306 = pneg %p209
      %s307 = smul.u32 16, %s23
      %p308 = scmp.lt.s32.totalorder %s22, 1
      %s309 = scalar_select %p308, %s22, 1
      %p310 = scmp.lt.s32.totalorder %s307, 15
      %s311 = scalar_select %p310, %s307, 15
      %s312 = smul.addr %s309, 16
      %s313 = sadd.s32 %s311, %s312
      %s314 = smul.addr %s313, 4
      %s315 = scalar_lea.vmem %s7, %s314
      %s316 = smul.u32 16, %s23
      %p317 = scmp.lt.s32.totalorder %s22, 1
      %s318 = scalar_select %p317, %s22, 1
      %p319 = scmp.lt.s32.totalorder %s316, 15
      %s320 = scalar_select %p319, %s316, 15
      %s321 = smul.addr %s320, 3
      %s322 = smul.addr %s318, 48
      %s323 = sadd.s32 %s321, %s322
      %s324 = smul.addr %s323, 4
      %s325 = scalar_lea.vmem %s0, %s324
      %s326 = smul.u32 16, %s23
      %s327 = smul.u32 16, %s23
      %p328 = scmp.lt.s32.totalorder %s327, 15
      %s329 = scalar_select %p328, %s327, 15
      %s330 = smul.addr %s329, 4
      %s331 = scalar_lea.vmem %s6, %s330
      %s332 = smul.u32 16, %s23
      %s333 = smul.u32 16, %s23
      %p334 = scmp.lt.s32.totalorder %s22, 1
      %s335 = scalar_select %p334, %s22, 1
      %p336 = scmp.lt.s32.totalorder %s333, 15
      %s337 = scalar_select %p336, %s333, 15
      %s338 = smul.addr %s335, 16
      %s339 = sadd.s32 %s337, %s338
      %s340 = smul.addr %s339, 4
      %s341 = scalar_lea.vmem %s7, %s340
      %s342 = smul.u32 16, %s23
      %v344 = vld [vmem:[%s325] sm:$0xff]
      %v345 = vld [vmem:[%s325 + $0x8] sm:$0xf]
      %v346 = vld [vmem:[%s325 + $0xc] sm:$0xff]
      %v347 = vld [vmem:[%s325 + $0x14] sm:$0xf]
      %v348 = vld [vmem:[%s325 + $0x18] sm:$0xff]
      %v349 = vld [vmem:[%s325 + $0x20] sm:$0xf]
      %v350 = vld [vmem:[%s325 + $0x24] sm:$0xff]
      %v351 = vld [vmem:[%s325 + $0x2c] sm:$0xf]
      %v352 = vld [vmem:[%s325 + $0x30] sm:$0xff]
      %v353 = vld [vmem:[%s325 + $0x38] sm:$0xf]
      %v354 = vld [vmem:[%s325 + $0x3c] sm:$0xff]
      %v355 = vld [vmem:[%s325 + $0x44] sm:$0xf]
      %v356 = vld [vmem:[%s325 + $0x48] sm:$0xff]
      %v357 = vld [vmem:[%s325 + $0x50] sm:$0xf]
      %v358 = vld [vmem:[%s325 + $0x54] sm:$0xff]
      %v359 = vld [vmem:[%s325 + $0x5c] sm:$0xf]
      %v360 = vld [vmem:[%s325 + $0x60] sm:$0xff]
      %v361 = vld [vmem:[%s325 + $0x68] sm:$0xf]
      %v362 = vld [vmem:[%s325 + $0x6c] sm:$0xff]
      %v363 = vld [vmem:[%s325 + $0x74] sm:$0xf]
      %v364 = vld [vmem:[%s325 + $0x78] sm:$0xff]
      %v365 = vld [vmem:[%s325 + $0x80] sm:$0xf]
      %v366 = vld [vmem:[%s325 + $0x84] sm:$0xff]
      %v367 = vld [vmem:[%s325 + $0x8c] sm:$0xf]
      %v368 = vld [vmem:[%s325 + $0x90] sm:$0xff]
      %v369 = vld [vmem:[%s325 + $0x98] sm:$0xf]
      %v370 = vld [vmem:[%s325 + $0x9c] sm:$0xff]
      %v371 = vld [vmem:[%s325 + $0xa4] sm:$0xf]
      %v372 = vld [vmem:[%s325 + $0xa8] sm:$0xff]
      %v373 = vld [vmem:[%s325 + $0xb0] sm:$0xf]
      %v374 = vld [vmem:[%s325 + $0xb4] sm:$0xff]
      %v375 = vld [vmem:[%s325 + $0xbc] sm:$0xf]
      %v376 = vld [vmem:[%s1] sm:$0xf]
      %v377 = vld [vmem:[%s1 + $0x4] sm:$0xf]
      %v378 = vld [vmem:[%s1 + $0x8] sm:$0xf]
      %v379 = vld [vmem:[%s1 + $0xc] sm:$0xf]
      %v380 = vld [vmem:[%s1 + $0x10] sm:$0xf]
      %v381 = vld [vmem:[%s1 + $0x14] sm:$0xf]
      %v382 = vld [vmem:[%s1 + $0x18] sm:$0xf]
      %v383 = vld [vmem:[%s1 + $0x1c] sm:$0xf]
      %v384 = vld [vmem:[%s1 + $0x20] sm:$0xf]
      %v385 = vld [vmem:[%s1 + $0x24] sm:$0xf]
      %v386 = vld [vmem:[%s1 + $0x28] sm:$0xf]
      %v387 = vld [vmem:[%s1 + $0x2c] sm:$0xf]
      %v388 = vld [vmem:[%s1 + $0x30] sm:$0xf]
      %v389 = vld [vmem:[%s1 + $0x34] sm:$0xf]
      %v390 = vld [vmem:[%s1 + $0x38] sm:$0xf]
      %v391 = vld [vmem:[%s1 + $0x3c] sm:$0xf]
      %v392 = vld [vmem:[%s1 + $0x40] sm:$0xf]
      %v393 = vld [vmem:[%s1 + $0x44] sm:$0xf]
      %v394 = vld [vmem:[%s1 + $0x48] sm:$0xf]
      %v395 = vld [vmem:[%s1 + $0x4c] sm:$0xf]
      %v396 = vld [vmem:[%s1 + $0x50] sm:$0xf]
      %v397 = vld [vmem:[%s1 + $0x54] sm:$0xf]
      %v398 = vld [vmem:[%s1 + $0x58] sm:$0xf]
      %v399 = vld [vmem:[%s1 + $0x5c] sm:$0xf]
      %v400 = vld [vmem:[%s1 + $0x60] sm:$0xf]
      %v401 = vld [vmem:[%s1 + $0x64] sm:$0xf]
      %v402 = vld [vmem:[%s1 + $0x68] sm:$0xf]
      %v403 = vld [vmem:[%s1 + $0x6c] sm:$0xf]
      %v404 = vld [vmem:[%s1 + $0x70] sm:$0xf]
      %v405 = vld [vmem:[%s1 + $0x74] sm:$0xf]
      %v406 = vld [vmem:[%s1 + $0x78] sm:$0xf]
      %v407 = vld [vmem:[%s1 + $0x7c] sm:$0xf]
      %v408 = vld [vmem:[%s1 + $0x80] sm:$0xf]
      %v409 = vld [vmem:[%s1 + $0x84] sm:$0xf]
      %v410 = vld [vmem:[%s1 + $0x88] sm:$0xf]
      %v411 = vld [vmem:[%s1 + $0x8c] sm:$0xf]
      %v412 = vld [vmem:[%s1 + $0x90] sm:$0xf]
      %v413 = vld [vmem:[%s1 + $0x94] sm:$0xf]
      %v414 = vld [vmem:[%s1 + $0x98] sm:$0xf]
      %v415 = vld [vmem:[%s1 + $0x9c] sm:$0xf]
      %v416 = vld [vmem:[%s1 + $0xa0] sm:$0xf]
      %v417 = vld [vmem:[%s1 + $0xa4] sm:$0xf]
      %v418 = vld [vmem:[%s1 + $0xa8] sm:$0xf]
      %v419 = vld [vmem:[%s1 + $0xac] sm:$0xf]
      %v420 = vld [vmem:[%s1 + $0xb0] sm:$0xf]
      %v421 = vld [vmem:[%s1 + $0xb4] sm:$0xf]
      %v422 = vld [vmem:[%s1 + $0xb8] sm:$0xf]
      %v423 = vld [vmem:[%s1 + $0xbc] sm:$0xf]
      %v424 = vld [vmem:[%s2] sm:$0x1]
      %v426 = vlaneseq
      %v427 = vshrl.u32 %v426, 7
      %v428 = vsub.s32 0, %v427
      %v429 = vrot.slane %v424, %v428
      %v463 = vunpack.c.l.b16 %v344
      %v464 = vunpack.c.h.b16 %v344
      %v465 = vunpack.c.l.b16 %v345
      %v466 = vunpack.c.l.b16 %v346
      %v467 = vunpack.c.h.b16 %v346
      %v468 = vunpack.c.l.b16 %v347
      %v469 = vunpack.c.l.b16 %v348
      %v470 = vunpack.c.h.b16 %v348
      %v471 = vunpack.c.l.b16 %v349
      %v472 = vunpack.c.l.b16 %v350
      %v473 = vunpack.c.h.b16 %v350
      %v474 = vunpack.c.l.b16 %v351
      %v475 = vunpack.c.l.b16 %v352
      %v476 = vunpack.c.h.b16 %v352
      %v477 = vunpack.c.l.b16 %v353
      %v478 = vunpack.c.l.b16 %v354
      %v479 = vunpack.c.h.b16 %v354
      %v480 = vunpack.c.l.b16 %v355
      %v481 = vunpack.c.l.b16 %v356
      %v482 = vunpack.c.h.b16 %v356
      %v483 = vunpack.c.l.b16 %v357
      %v484 = vunpack.c.l.b16 %v358
      %v485 = vunpack.c.h.b16 %v358
      %v486 = vunpack.c.l.b16 %v359
      %v487 = vunpack.c.l.b16 %v360
      %v488 = vunpack.c.h.b16 %v360
      %v489 = vunpack.c.l.b16 %v361
      %v490 = vunpack.c.l.b16 %v362
      %v491 = vunpack.c.h.b16 %v362
      %v492 = vunpack.c.l.b16 %v363
      %v493 = vunpack.c.l.b16 %v364
      %v494 = vunpack.c.h.b16 %v364
      %v495 = vunpack.c.l.b16 %v365
      %v496 = vunpack.c.l.b16 %v366
      %v497 = vunpack.c.h.b16 %v366
      %v498 = vunpack.c.l.b16 %v367
      %v499 = vunpack.c.l.b16 %v368
      %v500 = vunpack.c.h.b16 %v368
      %v501 = vunpack.c.l.b16 %v369
      %v502 = vunpack.c.l.b16 %v370
      %v503 = vunpack.c.h.b16 %v370
      %v504 = vunpack.c.l.b16 %v371
      %v505 = vunpack.c.l.b16 %v372
      %v506 = vunpack.c.h.b16 %v372
      %v507 = vunpack.c.l.b16 %v373
      %v508 = vunpack.c.l.b16 %v374
      %v509 = vunpack.c.h.b16 %v374
      %v510 = vunpack.c.l.b16 %v375
      %v511 = vpack.c.b16 %v466, %v463
      %v512 = vpack.c.b16 %v467, %v464
      %v513 = vpack.c.b16 %v468, %v465
      %v514 = vpack.c.b16 %v472, %v469
      %v515 = vpack.c.b16 %v473, %v470
      %v516 = vpack.c.b16 %v474, %v471
      %v517 = vpack.c.b16 %v478, %v475
      %v518 = vpack.c.b16 %v479, %v476
      %v519 = vpack.c.b16 %v480, %v477
      %v520 = vpack.c.b16 %v484, %v481
      %v521 = vpack.c.b16 %v485, %v482
      %v522 = vpack.c.b16 %v486, %v483
      %v523 = vpack.c.b16 %v490, %v487
      %v524 = vpack.c.b16 %v491, %v488
      %v525 = vpack.c.b16 %v492, %v489
      %v526 = vpack.c.b16 %v496, %v493
      %v527 = vpack.c.b16 %v497, %v494
      %v528 = vpack.c.b16 %v498, %v495
      %v529 = vpack.c.b16 %v502, %v499
      %v530 = vpack.c.b16 %v503, %v500
      %v531 = vpack.c.b16 %v504, %v501
      %v532 = vpack.c.b16 %v508, %v505
      %v533 = vpack.c.b16 %v509, %v506
      %v534 = vpack.c.b16 %v510, %v507
      %v607 = vunpack.c.l.b16 %v376
      %v608 = vunpack.c.l.b16 %v377
      %v609 = vunpack.c.l.b16 %v378
      %v610 = vunpack.c.l.b16 %v379
      %v611 = vunpack.c.l.b16 %v380
      %v612 = vunpack.c.l.b16 %v381
      %v613 = vunpack.c.l.b16 %v382
      %v614 = vunpack.c.l.b16 %v383
      %v615 = vunpack.c.l.b16 %v384
      %v616 = vunpack.c.l.b16 %v385
      %v617 = vunpack.c.l.b16 %v386
      %v618 = vunpack.c.l.b16 %v387
      %v619 = vunpack.c.l.b16 %v388
      %v620 = vunpack.c.l.b16 %v389
      %v621 = vunpack.c.l.b16 %v390
      %v622 = vunpack.c.l.b16 %v391
      %v623 = vunpack.c.l.b16 %v392
      %v624 = vunpack.c.l.b16 %v393
      %v625 = vunpack.c.l.b16 %v394
      %v626 = vunpack.c.l.b16 %v395
      %v627 = vunpack.c.l.b16 %v396
      %v628 = vunpack.c.l.b16 %v397
      %v629 = vunpack.c.l.b16 %v398
      %v630 = vunpack.c.l.b16 %v399
      %v631 = vunpack.c.l.b16 %v400
      %v632 = vunpack.c.l.b16 %v401
      %v633 = vunpack.c.l.b16 %v402
      %v634 = vunpack.c.l.b16 %v403
      %v635 = vunpack.c.l.b16 %v404
      %v636 = vunpack.c.l.b16 %v405
      %v637 = vunpack.c.l.b16 %v406
      %v638 = vunpack.c.l.b16 %v407
      %v639 = vunpack.c.l.b16 %v408
      %v640 = vunpack.c.l.b16 %v409
      %v641 = vunpack.c.l.b16 %v410
      %v642 = vunpack.c.l.b16 %v411
      %v643 = vunpack.c.l.b16 %v412
      %v644 = vunpack.c.l.b16 %v413
      %v645 = vunpack.c.l.b16 %v414
      %v646 = vunpack.c.l.b16 %v415
      %v647 = vunpack.c.l.b16 %v416
      %v648 = vunpack.c.l.b16 %v417
      %v649 = vunpack.c.l.b16 %v418
      %v650 = vunpack.c.l.b16 %v419
      %v651 = vunpack.c.l.b16 %v420
      %v652 = vunpack.c.l.b16 %v421
      %v653 = vunpack.c.l.b16 %v422
      %v654 = vunpack.c.l.b16 %v423
      %v655 = vpack.c.b16 %v608, %v607
      %v656 = vpack.c.b16 %v610, %v609
      %v657 = vpack.c.b16 %v612, %v611
      %v658 = vpack.c.b16 %v614, %v613
      %v659 = vpack.c.b16 %v616, %v615
      %v660 = vpack.c.b16 %v618, %v617
      %v661 = vpack.c.b16 %v620, %v619
      %v662 = vpack.c.b16 %v622, %v621
      %v663 = vpack.c.b16 %v624, %v623
      %v664 = vpack.c.b16 %v626, %v625
      %v665 = vpack.c.b16 %v628, %v627
      %v666 = vpack.c.b16 %v630, %v629
      %v667 = vpack.c.b16 %v632, %v631
      %v668 = vpack.c.b16 %v634, %v633
      %v669 = vpack.c.b16 %v636, %v635
      %v670 = vpack.c.b16 %v638, %v637
      %v671 = vpack.c.b16 %v640, %v639
      %v672 = vpack.c.b16 %v642, %v641
      %v673 = vpack.c.b16 %v644, %v643
      %v674 = vpack.c.b16 %v646, %v645
      %v675 = vpack.c.b16 %v648, %v647
      %v676 = vpack.c.b16 %v650, %v649
      %v677 = vpack.c.b16 %v652, %v651
      %v678 = vpack.c.b16 %v654, %v653
      %703 = vmatprep.subr.bf16.mxu0 0
      %704 = vmatpush1.bf16.msra.mxu0 %v655
      %705 = vmatprep.subr.bf16.mxu0 0
      %706 = vmatpush1.bf16.msra.mxu0 %v656
      %707 = vmatprep.subr.bf16.mxu0 0
      %708 = vmatpush1.bf16.msra.mxu0 %v657
      %709 = vmatprep.subr.bf16.mxu0 0
      %710 = vmatpush1.bf16.msra.mxu0 %v658
      %711 = vmatprep.subr.bf16.mxu0 0
      %712 = vmatpush1.bf16.msra.mxu0 %v659
      %713 = vmatprep.subr.bf16.mxu0 0
      %714 = vmatpush1.bf16.msra.mxu0 %v660
      %715 = vmatprep.subr.bf16.mxu0 0
      %716 = vmatpush1.bf16.msra.mxu0 %v661
      %717 = vmatprep.subr.bf16.mxu0 0
      %718 = vmatpush1.bf16.msra.mxu0 %v662
      %719 = vmatprep.subr.bf16.mxu0 0
      %720 = vmatpush1.bf16.msra.mxu0 %v663
      %721 = vmatprep.subr.bf16.mxu0 0
      %722 = vmatpush1.bf16.msra.mxu0 %v664
      %723 = vmatprep.subr.bf16.mxu0 0
      %724 = vmatpush1.bf16.msra.mxu0 %v665
      %725 = vmatprep.subr.bf16.mxu0 0
      %726 = vmatpush1.bf16.msra.mxu0 %v666
      %727 = vmatprep.subr.bf16.mxu0 0
      %728 = vmatpush1.bf16.msra.mxu0 %v667
      %729 = vmatprep.subr.bf16.mxu0 0
      %730 = vmatpush1.bf16.msra.mxu0 %v668
      %731 = vmatprep.subr.bf16.mxu0 0
      %732 = vmatpush1.bf16.msra.mxu0 %v669
      %733 = vmatprep.subr.bf16.mxu0 0
      %734 = vmatpush1.bf16.msra.mxu0 %v670
      %735 = vmatprep.mubr.bf16.mxu0 %v512
      %736 = vmatmul.mubr.bf16.gmra.mrb[0].mxu0 %v511
      %v737 = vpop.f32.mrb[0].mxu0
      %v738 = vadd.f32 %v429, %v737
      %v739 = vpop.f32.mrb[0].mxu0
      %v740 = vpop.f32.mrb[0].mxu0
      %v741 = vadd.f32 %v429, %v740
      %v742 = vpop.f32.mrb[0].mxu0
      %743 = vmatprep.mubr.bf16.mxu0 %v515
      %744 = vmatmul.mubr.bf16.gmra.mrb[0].mxu0 %v514
      %v745 = vpop.f32.mrb[0].mxu0
      %v746 = vadd.f32 %v429, %v745
      %v747 = vpop.f32.mrb[0].mxu0
      %v748 = vpop.f32.mrb[0].mxu0
      %v749 = vadd.f32 %v429, %v748
      %v750 = vpop.f32.mrb[0].mxu0
      %751 = vmatprep.mubr.bf16.mxu0 %v518
      %752 = vmatmul.mubr.bf16.gmra.mrb[0].mxu0 %v517
      %v753 = vpop.f32.mrb[0].mxu0
      %v754 = vadd.f32 %v429, %v753
      %v755 = vpop.f32.mrb[0].mxu0
      %v756 = vpop.f32.mrb[0].mxu0
      %v757 = vadd.f32 %v429, %v756
      %v758 = vpop.f32.mrb[0].mxu0
      %759 = vmatprep.mubr.bf16.mxu0 %v521
      %760 = vmatmul.mubr.bf16.gmra.mrb[0].mxu0 %v520
      %v761 = vpop.f32.mrb[0].mxu0
      %v762 = vadd.f32 %v429, %v761
      %v763 = vpop.f32.mrb[0].mxu0
      %v764 = vpop.f32.mrb[0].mxu0
      %v765 = vadd.f32 %v429, %v764
      %v766 = vpop.f32.mrb[0].mxu0
      %767 = vmatprep.mubr.bf16.mxu0 %v524
      %768 = vmatmul.mubr.bf16.gmra.mrb[0].mxu0 %v523
      %v769 = vpop.f32.mrb[0].mxu0
      %v770 = vadd.f32 %v429, %v769
      %v771 = vpop.f32.mrb[0].mxu0
      %v772 = vpop.f32.mrb[0].mxu0
      %v773 = vadd.f32 %v429, %v772
      %v774 = vpop.f32.mrb[0].mxu0
      %775 = vmatprep.mubr.bf16.mxu0 %v527
      %776 = vmatmul.mubr.bf16.gmra.mrb[0].mxu0 %v526
      %v777 = vpop.f32.mrb[0].mxu0
      %v778 = vadd.f32 %v429, %v777
      %v779 = vpop.f32.mrb[0].mxu0
      %v780 = vpop.f32.mrb[0].mxu0
      %v781 = vadd.f32 %v429, %v780
      %v782 = vpop.f32.mrb[0].mxu0
      %783 = vmatprep.mubr.bf16.mxu0 %v530
      %784 = vmatmul.mubr.bf16.gmra.mrb[0].mxu0 %v529
      %v785 = vpop.f32.mrb[0].mxu0
      %v786 = vadd.f32 %v429, %v785
      %v787 = vpop.f32.mrb[0].mxu0
      %v788 = vpop.f32.mrb[0].mxu0
      %v789 = vadd.f32 %v429, %v788
      %v790 = vpop.f32.mrb[0].mxu0
      %791 = vmatprep.mubr.bf16.mxu0 %v533
      %792 = vmatmul.mubr.bf16.gmra.mrb[0].mxu0 %v532
      %v793 = vpop.f32.mrb[0].mxu0
      %v794 = vadd.f32 %v429, %v793
      %v795 = vpop.f32.mrb[0].mxu0
      %v796 = vpop.f32.mrb[0].mxu0
      %v797 = vadd.f32 %v429, %v796
      %v798 = vpop.f32.mrb[0].mxu0
      %799 = vdwg.mxu0
      %800 = vmatprep.subr.bf16.mxu0 0
      %801 = vmatpush1.bf16.msra.mxu0 %v671
      %802 = vmatprep.subr.bf16.mxu0 0
      %803 = vmatpush1.bf16.msra.mxu0 %v672
      %804 = vmatprep.subr.bf16.mxu0 0
      %805 = vmatpush1.bf16.msra.mxu0 %v673
      %806 = vmatprep.subr.bf16.mxu0 0
      %807 = vmatpush1.bf16.msra.mxu0 %v674
      %808 = vmatprep.subr.bf16.mxu0 0
      %809 = vmatpush1.bf16.msra.mxu0 %v675
      %810 = vmatprep.subr.bf16.mxu0 0
      %811 = vmatpush1.bf16.msra.mxu0 %v676
      %812 = vmatprep.subr.bf16.mxu0 0
      %813 = vmatpush1.bf16.msra.mxu0 %v677
      %814 = vmatprep.subr.bf16.mxu0 0
      %815 = vmatpush1.bf16.msra.mxu0 %v678
      %816 = vmatprep.subr.bf16.mxu0 0
      %817 = vmatpush1.bf16.msra.mxu0 0
      %818 = vmatprep.subr.bf16.mxu0 0
      %819 = vmatpush1.bf16.msra.mxu0 0
      %820 = vmatprep.subr.bf16.mxu0 0
      %821 = vmatpush1.bf16.msra.mxu0 0
      %822 = vmatprep.subr.bf16.mxu0 0
      %823 = vmatpush1.bf16.msra.mxu0 0
      %824 = vmatprep.subr.bf16.mxu0 0
      %825 = vmatpush1.bf16.msra.mxu0 0
      %826 = vmatprep.subr.bf16.mxu0 0
      %827 = vmatpush1.bf16.msra.mxu0 0
      %828 = vmatprep.subr.bf16.mxu0 0
      %829 = vmatpush1.bf16.msra.mxu0 0
      %830 = vmatprep.subr.bf16.mxu0 0
      %831 = vmatpush1.bf16.msra.mxu0 0
      %832 = vmatprep.mubr.bf16.mxu0 0
      %833 = vmatmul.mubr.bf16.gmra.mrb[0].mxu0 %v513
      %v834 = vpop.f32.mrb[0].mxu0
      %v835 = vadd.f32 %v738, %v834
      %v836 = vpop.f32.mrb[0].mxu0
      %v837 = vpop.f32.mrb[0].mxu0
      %v838 = vadd.f32 %v741, %v837
      %v839 = vpop.f32.mrb[0].mxu0
      %840 = vmatprep.mubr.bf16.mxu0 0
      %841 = vmatmul.mubr.bf16.gmra.mrb[0].mxu0 %v516
      %v842 = vpop.f32.mrb[0].mxu0
      %v843 = vadd.f32 %v746, %v842
      %v844 = vpop.f32.mrb[0].mxu0
      %v845 = vpop.f32.mrb[0].mxu0
      %v846 = vadd.f32 %v749, %v845
      %v847 = vpop.f32.mrb[0].mxu0
      %848 = vmatprep.mubr.bf16.mxu0 0
      %849 = vmatmul.mubr.bf16.gmra.mrb[0].mxu0 %v519
      %v850 = vpop.f32.mrb[0].mxu0
      %v851 = vadd.f32 %v754, %v850
      %v852 = vpop.f32.mrb[0].mxu0
      %v853 = vpop.f32.mrb[0].mxu0
      %v854 = vadd.f32 %v757, %v853
      %v855 = vpop.f32.mrb[0].mxu0
      %856 = vmatprep.mubr.bf16.mxu0 0
      %857 = vmatmul.mubr.bf16.gmra.mrb[0].mxu0 %v522
      %v858 = vpop.f32.mrb[0].mxu0
      %v859 = vadd.f32 %v762, %v858
      %v860 = vpop.f32.mrb[0].mxu0
      %v861 = vpop.f32.mrb[0].mxu0
      %v862 = vadd.f32 %v765, %v861
      %v863 = vpop.f32.mrb[0].mxu0
      %864 = vmatprep.mubr.bf16.mxu0 0
      %865 = vmatmul.mubr.bf16.gmra.mrb[0].mxu0 %v525
      %v866 = vpop.f32.mrb[0].mxu0
      %v867 = vadd.f32 %v770, %v866
      %v868 = vpop.f32.mrb[0].mxu0
      %v869 = vpop.f32.mrb[0].mxu0
      %v870 = vadd.f32 %v773, %v869
      %v871 = vpop.f32.mrb[0].mxu0
      %872 = vmatprep.mubr.bf16.mxu0 0
      %873 = vmatmul.mubr.bf16.gmra.mrb[0].mxu0 %v528
      %v874 = vpop.f32.mrb[0].mxu0
      %v875 = vadd.f32 %v778, %v874
      %v876 = vpop.f32.mrb[0].mxu0
      %v877 = vpop.f32.mrb[0].mxu0
      %v878 = vadd.f32 %v781, %v877
      %v879 = vpop.f32.mrb[0].mxu0
      %880 = vmatprep.mubr.bf16.mxu0 0
      %881 = vmatmul.mubr.bf16.gmra.mrb[0].mxu0 %v531
      %v882 = vpop.f32.mrb[0].mxu0
      %v883 = vadd.f32 %v786, %v882
      %v884 = vpop.f32.mrb[0].mxu0
      %v885 = vpop.f32.mrb[0].mxu0
      %v886 = vadd.f32 %v789, %v885
      %v887 = vpop.f32.mrb[0].mxu0
      %888 = vmatprep.mubr.bf16.mxu0 0
      %889 = vmatmul.mubr.bf16.gmra.mrb[0].mxu0 %v534
      %v890 = vpop.f32.mrb[0].mxu0
      %v891 = vadd.f32 %v794, %v890
      %v892 = vpop.f32.mrb[0].mxu0
      %v893 = vpop.f32.mrb[0].mxu0
      %v894 = vadd.f32 %v797, %v893
      %v895 = vpop.f32.mrb[0].mxu0
      %896 = vdwg.mxu0
      %v897 = vld [vmem:[%s3] sm:$0x1]
      %v898 = vld [vmem:[%s4] sm:$0x1]
      %vm899 = vcmask 523264
      %v900 = vsel %vm899, %v835, 0.0
      %901 = vadd.xlane.f32.xlu0 %v900
      %v902 = vpop.xlane.xlu0 %901
      %v903 = vsel %vm899, %v838, 0.0
      %904 = vadd.xlane.f32.xlu0 %v903
      %v905 = vpop.xlane.xlu0 %904
      %v906 = vsel %vm899, %v843, 0.0
      %907 = vadd.xlane.f32.xlu0 %v906
      %v908 = vpop.xlane.xlu0 %907
      %v909 = vsel %vm899, %v846, 0.0
      %910 = vadd.xlane.f32.xlu0 %v909
      %v911 = vpop.xlane.xlu0 %910
      %v912 = vsel %vm899, %v851, 0.0
      %913 = vadd.xlane.f32.xlu0 %v912
      %v914 = vpop.xlane.xlu0 %913
      %v915 = vsel %vm899, %v854, 0.0
      %916 = vadd.xlane.f32.xlu0 %v915
      %v917 = vpop.xlane.xlu0 %916
      %v918 = vsel %vm899, %v859, 0.0
      %919 = vadd.xlane.f32.xlu0 %v918
      %v920 = vpop.xlane.xlu0 %919
      %v921 = vsel %vm899, %v862, 0.0
      %922 = vadd.xlane.f32.xlu0 %v921
      %v923 = vpop.xlane.xlu0 %922
      %v924 = vsel %vm899, %v867, 0.0
      %925 = vadd.xlane.f32.xlu0 %v924
      %v926 = vpop.xlane.xlu0 %925
      %v927 = vsel %vm899, %v870, 0.0
      %928 = vadd.xlane.f32.xlu0 %v927
      %v929 = vpop.xlane.xlu0 %928
      %v930 = vsel %vm899, %v875, 0.0
      %931 = vadd.xlane.f32.xlu0 %v930
      %v932 = vpop.xlane.xlu0 %931
      %v933 = vsel %vm899, %v878, 0.0
      %934 = vadd.xlane.f32.xlu0 %v933
      %v935 = vpop.xlane.xlu0 %934
      %v936 = vsel %vm899, %v883, 0.0
      %937 = vadd.xlane.f32.xlu0 %v936
      %v938 = vpop.xlane.xlu0 %937
      %v939 = vsel %vm899, %v886, 0.0
      %940 = vadd.xlane.f32.xlu0 %v939
      %v941 = vpop.xlane.xlu0 %940
      %v942 = vsel %vm899, %v891, 0.0
      %943 = vadd.xlane.f32.xlu0 %v942
      %v944 = vpop.xlane.xlu0 %943
      %v945 = vsel %vm899, %v894, 0.0
      %946 = vadd.xlane.f32.xlu0 %v945
      %v947 = vpop.xlane.xlu0 %946
      %v948 = vrcp.pop 64.0
      %v949 = vmul.f32 %v902, %v948
      %v950 = vmul.f32 %v905, %v948
      %v951 = vmul.f32 %v908, %v948
      %v952 = vmul.f32 %v911, %v948
      %v953 = vmul.f32 %v914, %v948
      %v954 = vmul.f32 %v917, %v948
      %v955 = vmul.f32 %v920, %v948
      %v956 = vmul.f32 %v923, %v948
      %v957 = vmul.f32 %v926, %v948
      %v958 = vmul.f32 %v929, %v948
      %v959 = vmul.f32 %v932, %v948
      %v960 = vmul.f32 %v935, %v948
      %v961 = vmul.f32 %v938, %v948
      %v962 = vmul.f32 %v941, %v948
      %v963 = vmul.f32 %v944, %v948
      %v964 = vmul.f32 %v947, %v948
      %v965 = vsub.f32 %v835, %v949
      %v966 = vsub.f32 %v838, %v950
      %v967 = vsub.f32 %v843, %v951
      %v968 = vsub.f32 %v846, %v952
      %v969 = vsub.f32 %v851, %v953
      %v970 = vsub.f32 %v854, %v954
      %v971 = vsub.f32 %v859, %v955
      %v972 = vsub.f32 %v862, %v956
      %v973 = vsub.f32 %v867, %v957
      %v974 = vsub.f32 %v870, %v958
      %v975 = vsub.f32 %v875, %v959
      %v976 = vsub.f32 %v878, %v960
      %v977 = vsub.f32 %v883, %v961
      %v978 = vsub.f32 %v886, %v962
      %v979 = vsub.f32 %v891, %v963
      %v980 = vsub.f32 %v894, %v964
      %v981 = vmul.f32 %v965, %v965
      %v982 = vmul.f32 %v966, %v966
      %v983 = vmul.f32 %v967, %v967
      %v984 = vmul.f32 %v968, %v968
      %v985 = vmul.f32 %v969, %v969
      %v986 = vmul.f32 %v970, %v970
      %v987 = vmul.f32 %v971, %v971
      %v988 = vmul.f32 %v972, %v972
      %v989 = vmul.f32 %v973, %v973
      %v990 = vmul.f32 %v974, %v974
      %v991 = vmul.f32 %v975, %v975
      %v992 = vmul.f32 %v976, %v976
      %v993 = vmul.f32 %v977, %v977
      %v994 = vmul.f32 %v978, %v978
      %v995 = vmul.f32 %v979, %v979
      %v996 = vmul.f32 %v980, %v980
      %v997 = vsel %vm899, %v981, 0.0
      %998 = vadd.xlane.f32.xlu0 %v997
      %v999 = vpop.xlane.xlu0 %998
      %v1000 = vsel %vm899, %v982, 0.0
      %1001 = vadd.xlane.f32.xlu0 %v1000
      %v1002 = vpop.xlane.xlu0 %1001
      %v1003 = vsel %vm899, %v983, 0.0
      %1004 = vadd.xlane.f32.xlu0 %v1003
      %v1005 = vpop.xlane.xlu0 %1004
      %v1006 = vsel %vm899, %v984, 0.0
      %1007 = vadd.xlane.f32.xlu0 %v1006
      %v1008 = vpop.xlane.xlu0 %1007
      %v1009 = vsel %vm899, %v985, 0.0
      %1010 = vadd.xlane.f32.xlu0 %v1009
      %v1011 = vpop.xlane.xlu0 %1010
      %v1012 = vsel %vm899, %v986, 0.0
      %1013 = vadd.xlane.f32.xlu0 %v1012
      %v1014 = vpop.xlane.xlu0 %1013
      %v1015 = vsel %vm899, %v987, 0.0
      %1016 = vadd.xlane.f32.xlu0 %v1015
      %v1017 = vpop.xlane.xlu0 %1016
      %v1018 = vsel %vm899, %v988, 0.0
      %1019 = vadd.xlane.f32.xlu0 %v1018
      %v1020 = vpop.xlane.xlu0 %1019
      %v1021 = vsel %vm899, %v989, 0.0
      %1022 = vadd.xlane.f32.xlu0 %v1021
      %v1023 = vpop.xlane.xlu0 %1022
      %v1024 = vsel %vm899, %v990, 0.0
      %1025 = vadd.xlane.f32.xlu0 %v1024
      %v1026 = vpop.xlane.xlu0 %1025
      %v1027 = vsel %vm899, %v991, 0.0
      %1028 = vadd.xlane.f32.xlu0 %v1027
      %v1029 = vpop.xlane.xlu0 %1028
      %v1030 = vsel %vm899, %v992, 0.0
      %1031 = vadd.xlane.f32.xlu0 %v1030
      %v1032 = vpop.xlane.xlu0 %1031
      %v1033 = vsel %vm899, %v993, 0.0
      %1034 = vadd.xlane.f32.xlu0 %v1033
      %v1035 = vpop.xlane.xlu0 %1034
      %v1036 = vsel %vm899, %v994, 0.0
      %1037 = vadd.xlane.f32.xlu0 %v1036
      %v1038 = vpop.xlane.xlu0 %1037
      %v1039 = vsel %vm899, %v995, 0.0
      %1040 = vadd.xlane.f32.xlu0 %v1039
      %v1041 = vpop.xlane.xlu0 %1040
      %v1042 = vsel %vm899, %v996, 0.0
      %1043 = vadd.xlane.f32.xlu0 %v1042
      %v1044 = vpop.xlane.xlu0 %1043
      %v1045 = vmul.f32 %v999, %v948
      %v1046 = vmul.f32 %v1002, %v948
      %v1047 = vmul.f32 %v1005, %v948
      %v1048 = vmul.f32 %v1008, %v948
      %v1049 = vmul.f32 %v1011, %v948
      %v1050 = vmul.f32 %v1014, %v948
      %v1051 = vmul.f32 %v1017, %v948
      %v1052 = vmul.f32 %v1020, %v948
      %v1053 = vmul.f32 %v1023, %v948
      %v1054 = vmul.f32 %v1026, %v948
      %v1055 = vmul.f32 %v1029, %v948
      %v1056 = vmul.f32 %v1032, %v948
      %v1057 = vmul.f32 %v1035, %v948
      %v1058 = vmul.f32 %v1038, %v948
      %v1059 = vmul.f32 %v1041, %v948
      %v1060 = vmul.f32 %v1044, %v948
      %v1061 = vadd.f32 %v1045, 1e-05
      %v1062 = vadd.f32 %v1046, 1e-05
      %v1063 = vadd.f32 %v1047, 1e-05
      %v1064 = vadd.f32 %v1048, 1e-05
      %v1065 = vadd.f32 %v1049, 1e-05
      %v1066 = vadd.f32 %v1050, 1e-05
      %v1067 = vadd.f32 %v1051, 1e-05
      %v1068 = vadd.f32 %v1052, 1e-05
      %v1069 = vadd.f32 %v1053, 1e-05
      %v1070 = vadd.f32 %v1054, 1e-05
      %v1071 = vadd.f32 %v1055, 1e-05
      %v1072 = vadd.f32 %v1056, 1e-05
      %v1073 = vadd.f32 %v1057, 1e-05
      %v1074 = vadd.f32 %v1058, 1e-05
      %v1075 = vadd.f32 %v1059, 1e-05
      %v1076 = vadd.f32 %v1060, 1e-05
      %v1077 = vrsqrt.pop %v1061
      %v1078 = vrsqrt.pop %v1062
      %v1079 = vrsqrt.pop %v1063
      %v1080 = vrsqrt.pop %v1064
      %v1081 = vrsqrt.pop %v1065
      %v1082 = vrsqrt.pop %v1066
      %v1083 = vrsqrt.pop %v1067
      %v1084 = vrsqrt.pop %v1068
      %v1085 = vrsqrt.pop %v1069
      %v1086 = vrsqrt.pop %v1070
      %v1087 = vrsqrt.pop %v1071
      %v1088 = vrsqrt.pop %v1072
      %v1089 = vrsqrt.pop %v1073
      %v1090 = vrsqrt.pop %v1074
      %v1091 = vrsqrt.pop %v1075
      %v1092 = vrsqrt.pop %v1076
      %v1093 = vmul.f32 %v965, %v1077
      %v1094 = vmul.f32 %v966, %v1078
      %v1095 = vmul.f32 %v967, %v1079
      %v1096 = vmul.f32 %v968, %v1080
      %v1097 = vmul.f32 %v969, %v1081
      %v1098 = vmul.f32 %v970, %v1082
      %v1099 = vmul.f32 %v971, %v1083
      %v1100 = vmul.f32 %v972, %v1084
      %v1101 = vmul.f32 %v973, %v1085
      %v1102 = vmul.f32 %v974, %v1086
      %v1103 = vmul.f32 %v975, %v1087
      %v1104 = vmul.f32 %v976, %v1088
      %v1105 = vmul.f32 %v977, %v1089
      %v1106 = vmul.f32 %v978, %v1090
      %v1107 = vmul.f32 %v979, %v1091
      %v1108 = vmul.f32 %v980, %v1092
      %v1110 = vlaneseq
      %v1111 = vshrl.u32 %v1110, 7
      %v1112 = vsub.s32 0, %v1111
      %v1113 = vrot.slane %v897, %v1112
      %v1115 = vmul.f32 %v1093, %v1113
      %v1116 = vmul.f32 %v1094, %v1113
      %v1117 = vmul.f32 %v1095, %v1113
      %v1118 = vmul.f32 %v1096, %v1113
      %v1119 = vmul.f32 %v1097, %v1113
      %v1120 = vmul.f32 %v1098, %v1113
      %v1121 = vmul.f32 %v1099, %v1113
      %v1122 = vmul.f32 %v1100, %v1113
      %v1123 = vmul.f32 %v1101, %v1113
      %v1124 = vmul.f32 %v1102, %v1113
      %v1125 = vmul.f32 %v1103, %v1113
      %v1126 = vmul.f32 %v1104, %v1113
      %v1127 = vmul.f32 %v1105, %v1113
      %v1128 = vmul.f32 %v1106, %v1113
      %v1129 = vmul.f32 %v1107, %v1113
      %v1130 = vmul.f32 %v1108, %v1113
      %v1132 = vlaneseq
      %v1133 = vshrl.u32 %v1132, 7
      %v1134 = vsub.s32 0, %v1133
      %v1135 = vrot.slane %v898, %v1134
      %v1137 = vadd.f32 %v1115, %v1135
      %v1138 = vadd.f32 %v1116, %v1135
      %v1139 = vadd.f32 %v1117, %v1135
      %v1140 = vadd.f32 %v1118, %v1135
      %v1141 = vadd.f32 %v1119, %v1135
      %v1142 = vadd.f32 %v1120, %v1135
      %v1143 = vadd.f32 %v1121, %v1135
      %v1144 = vadd.f32 %v1122, %v1135
      %v1145 = vadd.f32 %v1123, %v1135
      %v1146 = vadd.f32 %v1124, %v1135
      %v1147 = vadd.f32 %v1125, %v1135
      %v1148 = vadd.f32 %v1126, %v1135
      %v1149 = vadd.f32 %v1127, %v1135
      %v1150 = vadd.f32 %v1128, %v1135
      %v1151 = vadd.f32 %v1129, %v1135
      %v1152 = vadd.f32 %v1130, %v1135
      %v1153 = vlaneseq
      %v1154 = vshrl.u32 %v1153, 7
      %v1155 = vadd.s32 %v1154, 8
      %v1156 = vadd.s32 %v1154, 16
      %v1157 = vadd.s32 %v1154, 24
      %v1158 = vadd.s32 %v1154, 32
      %v1159 = vadd.s32 %v1154, 40
      %v1160 = vadd.s32 %v1154, 48
      %v1161 = vadd.s32 %v1154, 56
      %v1162 = vadd.s32 %v1154, 64
      %v1163 = vadd.s32 %v1154, 72
      %v1164 = vadd.s32 %v1154, 80
      %v1165 = vadd.s32 %v1154, 88
      %v1166 = vadd.s32 %v1154, 96
      %v1167 = vadd.s32 %v1154, 104
      %v1168 = vadd.s32 %v1154, 112
      %v1169 = vadd.s32 %v1154, 120
      %s1170 = smul.u32 %s23, 128
      %v1171 = vstv %s1170
      %v1172 = vadd.s32 %v1154, %v1171
      %v1173 = vadd.s32 %v1155, %v1171
      %v1174 = vadd.s32 %v1156, %v1171
      %v1175 = vadd.s32 %v1157, %v1171
      %v1176 = vadd.s32 %v1158, %v1171
      %v1177 = vadd.s32 %v1159, %v1171
      %v1178 = vadd.s32 %v1160, %v1171
      %v1179 = vadd.s32 %v1161, %v1171
      %v1180 = vadd.s32 %v1162, %v1171
      %v1181 = vadd.s32 %v1163, %v1171
      %v1182 = vadd.s32 %v1164, %v1171
      %v1183 = vadd.s32 %v1165, %v1171
      %v1184 = vadd.s32 %v1166, %v1171
      %v1185 = vadd.s32 %v1167, %v1171
      %v1186 = vadd.s32 %v1168, %v1171
      %v1187 = vadd.s32 %v1169, %v1171
      %vm1188 = vcmp.lt.s32.totalorder %v1172, 8
      %vm1189 = vcmp.lt.s32.totalorder %v1173, 8
      %vm1190 = vcmp.lt.s32.totalorder %v1174, 8
      %vm1191 = vcmp.lt.s32.totalorder %v1175, 8
      %vm1192 = vcmp.lt.s32.totalorder %v1176, 8
      %vm1193 = vcmp.lt.s32.totalorder %v1177, 8
      %vm1194 = vcmp.lt.s32.totalorder %v1178, 8
      %vm1195 = vcmp.lt.s32.totalorder %v1179, 8
      %vm1196 = vcmp.lt.s32.totalorder %v1180, 8
      %vm1197 = vcmp.lt.s32.totalorder %v1181, 8
      %vm1198 = vcmp.lt.s32.totalorder %v1182, 8
      %vm1199 = vcmp.lt.s32.totalorder %v1183, 8
      %vm1200 = vcmp.lt.s32.totalorder %v1184, 8
      %vm1201 = vcmp.lt.s32.totalorder %v1185, 8
      %vm1202 = vcmp.lt.s32.totalorder %v1186, 8
      %vm1203 = vcmp.lt.s32.totalorder %v1187, 8
      %vm1204 = vcmp.eq.s32.totalorder %v1172, 8
      %vm1205 = vcmp.eq.s32.totalorder %v1173, 8
      %vm1206 = vcmp.eq.s32.totalorder %v1174, 8
      %vm1207 = vcmp.eq.s32.totalorder %v1175, 8
      %vm1208 = vcmp.eq.s32.totalorder %v1176, 8
      %vm1209 = vcmp.eq.s32.totalorder %v1177, 8
      %vm1210 = vcmp.eq.s32.totalorder %v1178, 8
      %vm1211 = vcmp.eq.s32.totalorder %v1179, 8
      %vm1212 = vcmp.eq.s32.totalorder %v1180, 8
      %vm1213 = vcmp.eq.s32.totalorder %v1181, 8
      %vm1214 = vcmp.eq.s32.totalorder %v1182, 8
      %vm1215 = vcmp.eq.s32.totalorder %v1183, 8
      %vm1216 = vcmp.eq.s32.totalorder %v1184, 8
      %vm1217 = vcmp.eq.s32.totalorder %v1185, 8
      %vm1218 = vcmp.eq.s32.totalorder %v1186, 8
      %vm1219 = vcmp.eq.s32.totalorder %v1187, 8
      %v1220 = vld [vmem:[%s5] sm:$0x1]
      %v1221 = vsel %vm1204, 1, 0
      %v1222 = vsel %vm1205, 1, 0
      %v1223 = vsel %vm1206, 1, 0
      %v1224 = vsel %vm1207, 1, 0
      %v1225 = vsel %vm1208, 1, 0
      %v1226 = vsel %vm1209, 1, 0
      %v1227 = vsel %vm1210, 1, 0
      %v1228 = vsel %vm1211, 1, 0
      %v1229 = vsel %vm1212, 1, 0
      %v1230 = vsel %vm1213, 1, 0
      %v1231 = vsel %vm1214, 1, 0
      %v1232 = vsel %vm1215, 1, 0
      %v1233 = vsel %vm1216, 1, 0
      %v1234 = vsel %vm1217, 1, 0
      %v1235 = vsel %vm1218, 1, 0
      %v1236 = vsel %vm1219, 1, 0
      %vm1237 = vcmp.eq.s32.totalorder %v1221, 1
      %vm1238 = vcmp.eq.s32.totalorder %v1222, 1
      %vm1239 = vcmp.eq.s32.totalorder %v1223, 1
      %vm1240 = vcmp.eq.s32.totalorder %v1224, 1
      %vm1241 = vcmp.eq.s32.totalorder %v1225, 1
      %vm1242 = vcmp.eq.s32.totalorder %v1226, 1
      %vm1243 = vcmp.eq.s32.totalorder %v1227, 1
      %vm1244 = vcmp.eq.s32.totalorder %v1228, 1
      %vm1245 = vcmp.eq.s32.totalorder %v1229, 1
      %vm1246 = vcmp.eq.s32.totalorder %v1230, 1
      %vm1247 = vcmp.eq.s32.totalorder %v1231, 1
      %vm1248 = vcmp.eq.s32.totalorder %v1232, 1
      %vm1249 = vcmp.eq.s32.totalorder %v1233, 1
      %vm1250 = vcmp.eq.s32.totalorder %v1234, 1
      %vm1251 = vcmp.eq.s32.totalorder %v1235, 1
      %vm1252 = vcmp.eq.s32.totalorder %v1236, 1
      %v1254 = vlaneseq
      %v1255 = vshrl.u32 %v1254, 7
      %v1256 = vsub.s32 0, %v1255
      %v1257 = vrot.slane %v1220, %v1256
      %v1259 = vsel %vm1237, %v1257, 0.0
      %v1260 = vsel %vm1238, %v1257, 0.0
      %v1261 = vsel %vm1239, %v1257, 0.0
      %v1262 = vsel %vm1240, %v1257, 0.0
      %v1263 = vsel %vm1241, %v1257, 0.0
      %v1264 = vsel %vm1242, %v1257, 0.0
      %v1265 = vsel %vm1243, %v1257, 0.0
      %v1266 = vsel %vm1244, %v1257, 0.0
      %v1267 = vsel %vm1245, %v1257, 0.0
      %v1268 = vsel %vm1246, %v1257, 0.0
      %v1269 = vsel %vm1247, %v1257, 0.0
      %v1270 = vsel %vm1248, %v1257, 0.0
      %v1271 = vsel %vm1249, %v1257, 0.0
      %v1272 = vsel %vm1250, %v1257, 0.0
      %v1273 = vsel %vm1251, %v1257, 0.0
      %v1274 = vsel %vm1252, %v1257, 0.0
      %v1275 = vsel %vm1188, 1, 0
      %v1276 = vsel %vm1189, 1, 0
      %v1277 = vsel %vm1190, 1, 0
      %v1278 = vsel %vm1191, 1, 0
      %v1279 = vsel %vm1192, 1, 0
      %v1280 = vsel %vm1193, 1, 0
      %v1281 = vsel %vm1194, 1, 0
      %v1282 = vsel %vm1195, 1, 0
      %v1283 = vsel %vm1196, 1, 0
      %v1284 = vsel %vm1197, 1, 0
      %v1285 = vsel %vm1198, 1, 0
      %v1286 = vsel %vm1199, 1, 0
      %v1287 = vsel %vm1200, 1, 0
      %v1288 = vsel %vm1201, 1, 0
      %v1289 = vsel %vm1202, 1, 0
      %v1290 = vsel %vm1203, 1, 0
      %vm1291 = vcmp.eq.s32.totalorder %v1275, 1
      %vm1292 = vcmp.eq.s32.totalorder %v1276, 1
      %vm1293 = vcmp.eq.s32.totalorder %v1277, 1
      %vm1294 = vcmp.eq.s32.totalorder %v1278, 1
      %vm1295 = vcmp.eq.s32.totalorder %v1279, 1
      %vm1296 = vcmp.eq.s32.totalorder %v1280, 1
      %vm1297 = vcmp.eq.s32.totalorder %v1281, 1
      %vm1298 = vcmp.eq.s32.totalorder %v1282, 1
      %vm1299 = vcmp.eq.s32.totalorder %v1283, 1
      %vm1300 = vcmp.eq.s32.totalorder %v1284, 1
      %vm1301 = vcmp.eq.s32.totalorder %v1285, 1
      %vm1302 = vcmp.eq.s32.totalorder %v1286, 1
      %vm1303 = vcmp.eq.s32.totalorder %v1287, 1
      %vm1304 = vcmp.eq.s32.totalorder %v1288, 1
      %vm1305 = vcmp.eq.s32.totalorder %v1289, 1
      %vm1306 = vcmp.eq.s32.totalorder %v1290, 1
      %v1307 = vsel %vm1291, %v1137, %v1259
      %v1308 = vsel %vm1292, %v1138, %v1260
      %v1309 = vsel %vm1293, %v1139, %v1261
      %v1310 = vsel %vm1294, %v1140, %v1262
      %v1311 = vsel %vm1295, %v1141, %v1263
      %v1312 = vsel %vm1296, %v1142, %v1264
      %v1313 = vsel %vm1297, %v1143, %v1265
      %v1314 = vsel %vm1298, %v1144, %v1266
      %v1315 = vsel %vm1299, %v1145, %v1267
      %v1316 = vsel %vm1300, %v1146, %v1268
      %v1317 = vsel %vm1301, %v1147, %v1269
      %v1318 = vsel %vm1302, %v1148, %v1270
      %v1319 = vsel %vm1303, %v1149, %v1271
      %v1320 = vsel %vm1304, %v1150, %v1272
      %v1321 = vsel %vm1305, %v1151, %v1273
      %v1322 = vsel %vm1306, %v1152, %v1274
      %v1323 = vld [vmem:[%s331] sm:$0xf]
      %v1324 = vld [vmem:[%s331 + $0x4] sm:$0xf]
      %v1325 = vld [vmem:[%s331 + $0x8] sm:$0xf]
      %v1326 = vld [vmem:[%s331 + $0xc] sm:$0xf]
      %v1327 = vld [vmem:[%s331 + $0x10] sm:$0xf]
      %v1328 = vld [vmem:[%s331 + $0x14] sm:$0xf]
      %v1329 = vld [vmem:[%s331 + $0x18] sm:$0xf]
      %v1330 = vld [vmem:[%s331 + $0x1c] sm:$0xf]
      %v1331 = vld [vmem:[%s331 + $0x20] sm:$0xf]
      %v1332 = vld [vmem:[%s331 + $0x24] sm:$0xf]
      %v1333 = vld [vmem:[%s331 + $0x28] sm:$0xf]
      %v1334 = vld [vmem:[%s331 + $0x2c] sm:$0xf]
      %v1335 = vld [vmem:[%s331 + $0x30] sm:$0xf]
      %v1336 = vld [vmem:[%s331 + $0x34] sm:$0xf]
      %v1337 = vld [vmem:[%s331 + $0x38] sm:$0xf]
      %v1338 = vld [vmem:[%s331 + $0x3c] sm:$0xf]
      %v1339 = vunpack.c.l.bf16 %v1323
      %v1340 = vunpack.c.l.bf16 %v1324
      %v1341 = vunpack.c.l.bf16 %v1325
      %v1342 = vunpack.c.l.bf16 %v1326
      %v1343 = vunpack.c.l.bf16 %v1327
      %v1344 = vunpack.c.l.bf16 %v1328
      %v1345 = vunpack.c.l.bf16 %v1329
      %v1346 = vunpack.c.l.bf16 %v1330
      %v1347 = vunpack.c.l.bf16 %v1331
      %v1348 = vunpack.c.l.bf16 %v1332
      %v1349 = vunpack.c.l.bf16 %v1333
      %v1350 = vunpack.c.l.bf16 %v1334
      %v1351 = vunpack.c.l.bf16 %v1335
      %v1352 = vunpack.c.l.bf16 %v1336
      %v1353 = vunpack.c.l.bf16 %v1337
      %v1354 = vunpack.c.l.bf16 %v1338
      %v1355 = vadd.f32 %v1307, %v1339
      %v1356 = vadd.f32 %v1308, %v1340
      %v1357 = vadd.f32 %v1309, %v1341
      %v1358 = vadd.f32 %v1310, %v1342
      %v1359 = vadd.f32 %v1311, %v1343
      %v1360 = vadd.f32 %v1312, %v1344
      %v1361 = vadd.f32 %v1313, %v1345
      %v1362 = vadd.f32 %v1314, %v1346
      %v1363 = vadd.f32 %v1315, %v1347
      %v1364 = vadd.f32 %v1316, %v1348
      %v1365 = vadd.f32 %v1317, %v1349
      %v1366 = vadd.f32 %v1318, %v1350
      %v1367 = vadd.f32 %v1319, %v1351
      %v1368 = vadd.f32 %v1320, %v1352
      %v1369 = vadd.f32 %v1321, %v1353
      %v1370 = vadd.f32 %v1322, %v1354
      %v1371 = vpack.c.bf16 %v1356, %v1355
      %v1372 = vpack.c.bf16 %v1358, %v1357
      %v1373 = vpack.c.bf16 %v1360, %v1359
      %v1374 = vpack.c.bf16 %v1362, %v1361
      %v1375 = vpack.c.bf16 %v1364, %v1363
      %v1376 = vpack.c.bf16 %v1366, %v1365
      %v1377 = vpack.c.bf16 %v1368, %v1367
      %v1378 = vpack.c.bf16 %v1370, %v1369
      %v1387 = vunpack.c.l.b16 %v1371
      %v1388 = vunpack.c.h.b16 %v1371
      %v1389 = vunpack.c.l.b16 %v1372
      %v1390 = vunpack.c.h.b16 %v1372
      %v1391 = vunpack.c.l.b16 %v1373
      %v1392 = vunpack.c.h.b16 %v1373
      %v1393 = vunpack.c.l.b16 %v1374
      %v1394 = vunpack.c.h.b16 %v1374
      %v1395 = vunpack.c.l.b16 %v1375
      %v1396 = vunpack.c.h.b16 %v1375
      %v1397 = vunpack.c.l.b16 %v1376
      %v1398 = vunpack.c.h.b16 %v1376
      %v1399 = vunpack.c.l.b16 %v1377
      %v1400 = vunpack.c.h.b16 %v1377
      %v1401 = vunpack.c.l.b16 %v1378
      %v1402 = vunpack.c.h.b16 %v1378
      %v1403 = vpack.c.b16 %v1387, %v1387
      %v1404 = vpack.c.b16 %v1388, %v1388
      %v1405 = vpack.c.b16 %v1389, %v1389
      %v1406 = vpack.c.b16 %v1390, %v1390
      %v1407 = vpack.c.b16 %v1391, %v1391
      %v1408 = vpack.c.b16 %v1392, %v1392
      %v1409 = vpack.c.b16 %v1393, %v1393
      %v1410 = vpack.c.b16 %v1394, %v1394
      %v1411 = vpack.c.b16 %v1395, %v1395
      %v1412 = vpack.c.b16 %v1396, %v1396
      %v1413 = vpack.c.b16 %v1397, %v1397
      %v1414 = vpack.c.b16 %v1398, %v1398
      %v1415 = vpack.c.b16 %v1399, %v1399
      %v1416 = vpack.c.b16 %v1400, %v1400
      %v1417 = vpack.c.b16 %v1401, %v1401
      %v1418 = vpack.c.b16 %v1402, %v1402
      %vm1435 = vcmask 519168
      %1436 = vst.msk [vmem:[%s341] sm:$0xf] %vm1435, %v1403
      %1437 = vst.msk [vmem:[%s341 + $0x4] sm:$0xf] %vm1435, %v1404
      %1438 = vst.msk [vmem:[%s341 + $0x8] sm:$0xf] %vm1435, %v1405
      %1439 = vst.msk [vmem:[%s341 + $0xc] sm:$0xf] %vm1435, %v1406
      %1440 = vst.msk [vmem:[%s341 + $0x10] sm:$0xf] %vm1435, %v1407
      %1441 = vst.msk [vmem:[%s341 + $0x14] sm:$0xf] %vm1435, %v1408
      %1442 = vst.msk [vmem:[%s341 + $0x18] sm:$0xf] %vm1435, %v1409
      %1443 = vst.msk [vmem:[%s341 + $0x1c] sm:$0xf] %vm1435, %v1410
      %1444 = vst.msk [vmem:[%s341 + $0x20] sm:$0xf] %vm1435, %v1411
      %1445 = vst.msk [vmem:[%s341 + $0x24] sm:$0xf] %vm1435, %v1412
      %1446 = vst.msk [vmem:[%s341 + $0x28] sm:$0xf] %vm1435, %v1413
      %1447 = vst.msk [vmem:[%s341 + $0x2c] sm:$0xf] %vm1435, %v1414
      %1448 = vst.msk [vmem:[%s341 + $0x30] sm:$0xf] %vm1435, %v1415
      %1449 = vst.msk [vmem:[%s341 + $0x34] sm:$0xf] %vm1435, %v1416
      %1450 = vst.msk [vmem:[%s341 + $0x38] sm:$0xf] %vm1435, %v1417
      %1451 = vst.msk [vmem:[%s341 + $0x3c] sm:$0xf] %vm1435, %v1418
      %s1452 = smul.u32 16, %s23
      %p1453 = scmp.lt.s32.totalorder %s22, 1
      %s1454 = scalar_select %p1453, %s22, 1
      %p1455 = scmp.lt.s32.totalorder %s1452, 15
      %s1456 = scalar_select %p1455, %s1452, 15
      %s1457 = smul.addr %s1454, 16
      %s1458 = sadd.s32 %s1456, %s1457
      %s1459 = smul.addr %s1458, 4
      %s1460 = scalar_lea.vmem %s7, %s1459
      // Predicated region
      $region49: #{tpu_custom_call.1} parent=47 // pred_check
        %p1461 = pneg %p209
      $region50: #{tpu_custom_call.1} parent=47 // pred_check_branch
        %1463 = sbr.rel (%p1461) target = $region52
      $region51: #{tpu_custom_call.1} parent=47 // pred_region
        %s1464 = smul.u32 16, %s23
      $region52: #{tpu_custom_call.1} parent=47 // pred_fallthru
        _
    $region48: #{tpu_custom_call.1} parent=5 // pred_fallthru
      _
    %p1465 = scmp.le.s32.totalorder 2, %s13
    // Predicated region
    $region53: #{tpu_custom_call.1} parent=5 // pred_check
      %p1466 = pneg %p1465
    $region54: #{tpu_custom_call.1} parent=5 // pred_check_branch
      %1468 = sbr.rel (%p1466) target = $region56
    $region55: #{tpu_custom_call.1} parent=5 // pred_region
      %s1469 = ssub.s32 %s13, 2
      // Predicated region
      $region57: #{tpu_custom_call.1} parent=55 // pred_check
        %p1470 = pneg %p215
      $region58: #{tpu_custom_call.1} parent=55 // pred_check_branch
        %1472 = sbr.rel (%p1470) target = $region60
      $region59: #{tpu_custom_call.1} parent=55 // pred_region
        %s1473 = smul.u32 16, %s25
        %p1474 = scmp.lt.s32.totalorder %s24, 1
        %s1475 = scalar_select %p1474, %s24, 1
        %p1476 = scmp.lt.s32.totalorder %s1473, 15
        %s1477 = scalar_select %p1476, %s1473, 15
        %s1478 = smul.addr %s1475, 16
        %s1479 = sadd.s32 %s1477, %s1478
        %s1480 = smul.addr %s1479, 4
        %s1481 = scalar_lea.vmem %s7, %s1480
      $region60: #{tpu_custom_call.1} parent=55 // pred_fallthru
        _
    $region56: #{tpu_custom_call.1} parent=5 // pred_fallthru
      _
  $region6: #{tpu_custom_call.1} parent=0 // loop_footer
    %s17 = sadd.s32 1, %s13
  $region7: #{tpu_custom_call.1} parent=0 // loop_footer_branch
    %12 = sbr.rel target = $region3
  $region8: #{tpu_custom_call.1} parent=0 // loop_exit
    _

</llo_original>
